<compile_context>
chip_gen: v6e
topology: v6e:2x2x1
jax: 0.10.0
libtpu: 0.0.40
codegen_flags: <defaults>
</compile_context>

<pallas_src>
import jax
import jax.numpy as jnp
from jax.experimental import pallas as pl
from jax.experimental.pallas import tpu as pltpu


TILE_N = 4096    # rows per grid step for conv2 / conv3+mlp
TILE_N1 = 8192   # rows per grid step for conv1 (K=27, per-step overhead dominated)


def _round_up(x, m):
    return (x + m - 1) // m * m


def _choose_tile(n_rows, cap):
    """Tile size: multiple of 128; >= 2 grid steps when > 128 rows so the
    'parallel' N axis shards across both v7x TensorCores."""
    if n_rows <= 128:
        return 128
    half = _round_up((n_rows + 1) // 2, 128)
    return min(cap, half)


def _compiler_params():
    # Explicit 32 MiB scoped VMEM: avoids v5e's 16 MiB default silently capping
    # tiling, fits v6e's 128 MiB, and stays well under v7x's 64 MiB physical
    # (< 48 MiB guidance).  At TILE_N=4096 peak usage is ~17 MiB.
    return pltpu.CompilerParams(
        dimension_semantics=("parallel",),
        vmem_limit_bytes=32 * 1024 * 1024,
    )


# ----------------------------------------------------------------------------
# Pallas kernels
# ----------------------------------------------------------------------------
def _conv_kernel(x_ref, w_ref, o_ref):
    """One N-tile of a sparse conv folded into a single matmul.

    x_ref: (tile_n, 27*Cin) bf16 gathered (+mask-folded) neighbor features
    w_ref: (27*Cin, Cout)   bf16 weights for all 27 offsets (VMEM-resident)
    o_ref: (tile_n, Cout)   bf16 output (f32 MXU accumulation)
    """
    acc = jnp.dot(x_ref[...], w_ref[...], preferred_element_type=jnp.float32)
    o_ref[...] = acc.astype(o_ref.dtype)


def _conv_mlp_kernel(x_ref, w_ref, wm_ref, bm_ref, o_ref):
    """conv3 + Linear(64,3) fused; output through a lane-dense 128-wide slab.

    x_ref:  (tile_n, 27*32) bf16
    w_ref:  (27*32, 64)     bf16
    wm_ref: (64, 128)       bf16 (Linear weight, zero-padded from 3 cols)
    bm_ref: (1, 128)        f32  (Linear bias, zero-padded)
    o_ref:  (tile_n, 128)   bf16
    """
    h = jnp.dot(x_ref[...], w_ref[...], preferred_element_type=jnp.float32)
    y = jnp.dot(h.astype(jnp.bfloat16), wm_ref[...],
                preferred_element_type=jnp.float32) + bm_ref[...]
    o_ref[...] = y.astype(o_ref.dtype)


# ----------------------------------------------------------------------------
# Wrappers calling pallas_call
# ----------------------------------------------------------------------------
def sparse_conv3d(x, w, tile_cap=TILE_N):
    """x: [R, 27*Cin] bf16, w: [27*Cin, Cout] bf16 -> [R, Cout] bf16."""
    r, k = x.shape
    c_out = w.shape[-1]
    tile = _choose_tile(r, tile_cap)
    r_pad = _round_up(r, tile)
    if r_pad != r:
        x = jnp.pad(x, ((0, r_pad - r), (0, 0)))
    # NOTE: Cout=16/32 lanes -> masked partial stores; widening them would add
    # HBM writeback bytes, so left as-is per review (low priority).
    out = pl.pallas_call(
        _conv_kernel,
        out_shape=jax.ShapeDtypeStruct((r_pad, c_out), jnp.bfloat16),
        grid=(r_pad // tile,),
        in_specs=[
            pl.BlockSpec((tile, k), lambda i: (i, 0)),
            pl.BlockSpec((k, c_out), lambda i: (0, 0)),
        ],
        out_specs=pl.BlockSpec((tile, c_out), lambda i: (i, 0)),
        compiler_params=_compiler_params(),
    )(x, w)
    return out[:r] if r_pad != r else out


def sparse_conv3d_mlp(x, w3, w_mlp, b_mlp, tile_cap=TILE_N):
    """Fused conv3 + Linear: x [R, 27*32] bf16, w3 [27*32, 64] bf16,
    w_mlp [64, 3] bf16, b_mlp [1, 3] f32 -> logits [R, 3] bf16."""
    r, k = x.shape
    c_mid = w3.shape[-1]
    c_out = w_mlp.shape[-1]
    c_pad = 128  # lane-dense output slab; sliced back to c_out outside

    w_mlp_p = jnp.zeros((c_mid, c_pad), jnp.bfloat16).at[:, :c_out].set(w_mlp)
    b_mlp_p = jnp.zeros((1, c_pad), jnp.float32).at[:, :c_out].set(b_mlp)

    tile = _choose_tile(r, tile_cap)
    r_pad = _round_up(r, tile)
    if r_pad != r:
        x = jnp.pad(x, ((0, r_pad - r), (0, 0)))
    out = pl.pallas_call(
        _conv_mlp_kernel,
        out_shape=jax.ShapeDtypeStruct((r_pad, c_pad), jnp.bfloat16),
        grid=(r_pad // tile,),
        in_specs=[
            pl.BlockSpec((tile, k), lambda i: (i, 0)),
            pl.BlockSpec((k, c_mid), lambda i: (0, 0)),
            pl.BlockSpec((c_mid, c_pad), lambda i: (0, 0)),
            pl.BlockSpec((1, c_pad), lambda i: (0, 0)),
        ],
        out_specs=pl.BlockSpec((tile, c_pad), lambda i: (i, 0)),
        compiler_params=_compiler_params(),
    )(x, w3, w_mlp_p, b_mlp_p)
    return out[:r, :c_out]


# ----------------------------------------------------------------------------
# Plain-JAX glue: kernel-offset neighbor map (torchsparse "kmap")
# ----------------------------------------------------------------------------
def build_kernel_maps(coords):
    """coords: [N, 4] int32 (x, y, z, batch).

    Packed-key sort + searchsorted per offset (O(27*N*logN)).
    Returns idx [N, 27] int32 where missing neighbors map to row N (the shared
    all-zero feature row), i.e. the found-mask is folded into the index.
    """
    n = coords.shape[0]
    xyz = coords[:, :3].astype(jnp.int32)
    batch = coords[:, 3].astype(jnp.int32)

    offs = jnp.stack(
        jnp.meshgrid(
            jnp.arange(-1, 2), jnp.arange(-1, 2), jnp.arange(-1, 2),
            indexing="ij",
        ),
        axis=-1,
    ).reshape(-1, 3)  # [27, 3]

    # Pack (b, x+1, y+1, z+1) into one int key (shift by +1 so offset targets
    # stay non-negative; base = max coordinate + 3 covers the +1 offset).
    span = jnp.max(xyz) + 3

    def pack(b, p):
        return (((b * span + p[..., 0] + 1) * span + p[..., 1] + 1) * span
                + p[..., 2] + 1)

    keys = pack(batch, xyz)                               # [N]
    order = jnp.argsort(keys)
    keys_sorted = keys[order]

    tgt = xyz[:, None, :] + offs[None, :, :]              # [N, 27, 3]
    tgt_keys = pack(batch[:, None], tgt)                  # [N, 27]

    pos = jnp.clip(jnp.searchsorted(keys_sorted, tgt_keys), 0, n - 1)
    found = keys_sorted[pos] == tgt_keys
    idx = jnp.where(found, order[pos], n).astype(jnp.int32)   # not-found -> zero row
    return idx


# ----------------------------------------------------------------------------
# Model
# ----------------------------------------------------------------------------
def init_params(key):
    k1, k2, k3, k4, k5 = jax.random.split(key, 5)
    # torchsparse Conv3d kernels are stored as [K^3, Cin, Cout]; bias=False.
    return {
        "w1": jax.random.normal(k1, (27, 1, 16), jnp.float32) * 0.3,
        "w2": jax.random.normal(k2, (27, 16, 32), jnp.float32) * 0.1,
        "w3": jax.random.normal(k3, (27, 32, 64), jnp.float32) * 0.05,
        "w_mlp": jax.random.normal(k4, (64, 3), jnp.float32) * 0.1,
        "b_mlp": jax.random.normal(k5, (1, 3), jnp.float32) * 0.01,
    }


def _fold_weight(w):
    """[27, Cin, Cout] -> [27*Cin, Cout] bf16 (matches [N, 27*Cin] gather)."""
    return w.reshape(-1, w.shape[-1]).astype(jnp.bfloat16)


@jax.jit
def sparse_segmentation_net(coords, feats, params):
    n = feats.shape[0]
    idx = build_kernel_maps(coords)                       # [N, 27], miss -> n

    # One row padding scheme shared by all layers: n_pad >= n+1 so row n is an
    # all-zero row of every feature table; pad rows of the index map point at it,
    # so the 27x-expanded slabs are born already padded (no extra pad copies).
    tile = _choose_tile(n + 1, TILE_N)
    n_pad = _round_up(n + 1, tile)
    idx_pad = jnp.pad(idx, ((0, n_pad - n), (0, 0)), constant_values=n)

    def gather(tbl):
        # tbl: [n_pad, C] bf16 with rows >= n all-zero.
        # [n_pad, 27, C] -> [n_pad, 27*C] is a contiguous (no-copy) reshape.
        return tbl[idx_pad].reshape(n_pad, -1)

    x0 = jnp.pad(feats.astype(jnp.bfloat16), ((0, n_pad - n), (0, 0)))  # [n_pad, 1]

    # conv1: K=27 under-utilizes the MXU -> amortize step overhead with 8192-row
    # tiles (per review).  conv2 / conv3+mlp: 4096-row tiles.
    h1 = sparse_conv3d(gather(x0), _fold_weight(params["w1"]), tile_cap=TILE_N1)
    h2 = sparse_conv3d(gather(h1), _fold_weight(params["w2"]), tile_cap=TILE_N)

    logits = sparse_conv3d_mlp(
        gather(h2),
        _fold_weight(params["w3"]),
        params["w_mlp"].astype(jnp.bfloat16),
        params["b_mlp"],
        tile_cap=TILE_N,
    )
    return logits[:n].astype(jnp.float32)                 # [N, 3] f32


# ----------------------------------------------------------------------------
# Main
# ----------------------------------------------------------------------------
if __name__ == "__main__":
    key = jax.random.PRNGKey(0)
    kc0, kc1, kf, kp = jax.random.split(key, 4)

    # Two "point clouds" (batch=2), 32 unique voxels each in an 8^3 grid.
    GRID = 8
    PTS_PER_BATCH = 32
    lin0 = jax.random.permutation(kc0, GRID * GRID * GRID)[:PTS_PER_BATCH]
    lin1 = jax.random.permutation(kc1, GRID * GRID * GRID)[:PTS_PER_BATCH]

    def decode(lin, b):
        x = lin // (GRID * GRID)
        y = (lin // GRID) % GRID
        z = lin % GRID
        bcol = jnp.full_like(lin, b)
        return jnp.stack([x, y, z, bcol], axis=-1)

    coords = jnp.concatenate(
        [decode(lin0, 0), decode(lin1, 1)], axis=0
    ).astype(jnp.int32)                                     # [64, 4]
    feats = jax.random.normal(kf, (coords.shape[0], 1), jnp.float32)  # [64, 1]

    params = init_params(kp)

    out = sparse_segmentation_net(coords, feats, params)
    out = jax.block_until_ready(out)
    assert out.shape == (coords.shape[0], 3) and out.dtype == jnp.float32
    print("KERNEL_OK")
</pallas_src>

<mosaic_0001>
module attributes {stable_mosaic.version = 11 : i64} {
  func.func @_conv_kernel(%arg0: i32, %arg1: memref<128x27xbf16, #tpu.memory_space<vmem>>, %arg2: memref<27x16xbf16, #tpu.memory_space<vmem>>, %arg3: memref<128x16xbf16, #tpu.memory_space<vmem>>) attributes {dimension_semantics = [#tpu.dimension_semantics<parallel>], iteration_bounds = array<i64: 1>, scalar_prefetch = 0 : i64, scratch_operands = 0 : i64, tpu.core_type = #tpu.core_type<tc>, window_params = [{transform_indices = @transform_0, window_bounds = array<i64: 128, 27>}, {pipeline_mode = #tpu.pipeline_mode<synchronous>, transform_indices = @transform_1, window_bounds = array<i64: 27, 16>}, {transform_indices = @transform_2, window_bounds = array<i64: 128, 16>}]} {
    %c0 = arith.constant 0 : index
    %c0_0 = arith.constant 0 : index
    %0 = vector.load %arg1[%c0, %c0_0] : memref<128x27xbf16, #tpu.memory_space<vmem>>, vector<128x27xbf16>
    %c0_1 = arith.constant 0 : index
    %c0_2 = arith.constant 0 : index
    %1 = vector.load %arg2[%c0_1, %c0_2] : memref<27x16xbf16, #tpu.memory_space<vmem>>, vector<27x16xbf16>
    %cst = arith.constant dense<0.000000e+00> : vector<128x16xf32>
    %2 = tpu.matmul %0, %1, %cst {dimension_numbers = #tpu.dot_dimension_numbers<[1], [0], [0], [1], [0, 0, 1, 1], [], []>} : vector<128x27xbf16>, vector<27x16xbf16>, vector<128x16xf32> -> vector<128x16xf32>
    %3 = arith.truncf %2 : vector<128x16xf32> to vector<128x16xbf16>
    %c0_3 = arith.constant 0 : index
    %c0_4 = arith.constant 0 : index
    %4 = vector.load %arg3[%c0_3, %c0_4] : memref<128x16xbf16, #tpu.memory_space<vmem>>, vector<128x16xbf16>
    tpu.vector_store %arg3[%c0_3, %c0_4], %3 {strides = array<i32>} : memref<128x16xbf16, #tpu.memory_space<vmem>>, vector<128x16xbf16>,
    return
  }
  func.func @transform_0(%arg0: i32) -> (i32, i32) {
    %c0_i32 = arith.constant 0 : i32
    %c0_i32_0 = arith.constant 0 : i32
    return %arg0, %c0_i32 : i32, i32
  }
  func.func @transform_1(%arg0: i32) -> (i32, i32) {
    %c0_i32 = arith.constant 0 : i32
    %c0_i32_0 = arith.constant 0 : i32
    %c0_i32_1 = arith.constant 0 : i32
    return %c0_i32, %c0_i32_0 : i32, i32
  }
  func.func @transform_2(%arg0: i32) -> (i32, i32) {
    %c0_i32 = arith.constant 0 : i32
    %c0_i32_0 = arith.constant 0 : i32
    return %arg0, %c0_i32 : i32, i32
  }
}

module attributes {stable_mosaic.version = 11 : i64} {
  func.func @_conv_kernel(%arg0: i32, %arg1: memref<128x432xbf16, #tpu.memory_space<vmem>>, %arg2: memref<432x32xbf16, #tpu.memory_space<vmem>>, %arg3: memref<128x32xbf16, #tpu.memory_space<vmem>>) attributes {dimension_semantics = [#tpu.dimension_semantics<parallel>], iteration_bounds = array<i64: 1>, scalar_prefetch = 0 : i64, scratch_operands = 0 : i64, tpu.core_type = #tpu.core_type<tc>, window_params = [{transform_indices = @transform_0, window_bounds = array<i64: 128, 432>}, {pipeline_mode = #tpu.pipeline_mode<synchronous>, transform_indices = @transform_1, window_bounds = array<i64: 432, 32>}, {transform_indices = @transform_2, window_bounds = array<i64: 128, 32>}]} {
    %c0 = arith.constant 0 : index
    %c0_0 = arith.constant 0 : index
    %0 = vector.load %arg1[%c0, %c0_0] : memref<128x432xbf16, #tpu.memory_space<vmem>>, vector<128x432xbf16>
    %c0_1 = arith.constant 0 : index
    %c0_2 = arith.constant 0 : index
    %1 = vector.load %arg2[%c0_1, %c0_2] : memref<432x32xbf16, #tpu.memory_space<vmem>>, vector<432x32xbf16>
    %cst = arith.constant dense<0.000000e+00> : vector<128x32xf32>
    %2 = tpu.matmul %0, %1, %cst {dimension_numbers = #tpu.dot_dimension_numbers<[1], [0], [0], [1], [0, 0, 1, 1], [], []>} : vector<128x432xbf16>, vector<432x32xbf16>, vector<128x32xf32> -> vector<128x32xf32>
    %3 = arith.truncf %2 : vector<128x32xf32> to vector<128x32xbf16>
    %c0_3 = arith.constant 0 : index
    %c0_4 = arith.constant 0 : index
    %4 = vector.load %arg3[%c0_3, %c0_4] : memref<128x32xbf16, #tpu.memory_space<vmem>>, vector<128x32xbf16>
    tpu.vector_store %arg3[%c0_3, %c0_4], %3 {strides = array<i32>} : memref<128x32xbf16, #tpu.memory_space<vmem>>, vector<128x32xbf16>,
    return
  }
  func.func @transform_0(%arg0: i32) -> (i32, i32) {
    %c0_i32 = arith.constant 0 : i32
    %c0_i32_0 = arith.constant 0 : i32
    return %arg0, %c0_i32 : i32, i32
  }
  func.func @transform_1(%arg0: i32) -> (i32, i32) {
    %c0_i32 = arith.constant 0 : i32
    %c0_i32_0 = arith.constant 0 : i32
    %c0_i32_1 = arith.constant 0 : i32
    return %c0_i32, %c0_i32_0 : i32, i32
  }
  func.func @transform_2(%arg0: i32) -> (i32, i32) {
    %c0_i32 = arith.constant 0 : i32
    %c0_i32_0 = arith.constant 0 : i32
    return %arg0, %c0_i32 : i32, i32
  }
}

module attributes {stable_mosaic.version = 11 : i64} {
  func.func @_conv_mlp_kernel(%arg0: i32, %arg1: memref<128x864xbf16, #tpu.memory_space<vmem>>, %arg2: memref<864x64xbf16, #tpu.memory_space<vmem>>, %arg3: memref<64x128xbf16, #tpu.memory_space<vmem>>, %arg4: memref<1x128xf32, #tpu.memory_space<vmem>>, %arg5: memref<128x128xbf16, #tpu.memory_space<vmem>>) attributes {dimension_semantics = [#tpu.dimension_semantics<parallel>], iteration_bounds = array<i64: 1>, scalar_prefetch = 0 : i64, scratch_operands = 0 : i64, tpu.core_type = #tpu.core_type<tc>, window_params = [{transform_indices = @transform_0, window_bounds = array<i64: 128, 864>}, {pipeline_mode = #tpu.pipeline_mode<synchronous>, transform_indices = @transform_1, window_bounds = array<i64: 864, 64>}, {pipeline_mode = #tpu.pipeline_mode<synchronous>, transform_indices = @transform_2, window_bounds = array<i64: 64, 128>}, {pipeline_mode = #tpu.pipeline_mode<synchronous>, transform_indices = @transform_3, window_bounds = array<i64: 1, 128>}, {transform_indices = @transform_4, window_bounds = array<i64: 128, 128>}]} {
    %c0 = arith.constant 0 : index
    %c0_0 = arith.constant 0 : index
    %0 = vector.load %arg1[%c0, %c0_0] : memref<128x864xbf16, #tpu.memory_space<vmem>>, vector<128x864xbf16>
    %c0_1 = arith.constant 0 : index
    %c0_2 = arith.constant 0 : index
    %1 = vector.load %arg2[%c0_1, %c0_2] : memref<864x64xbf16, #tpu.memory_space<vmem>>, vector<864x64xbf16>
    %cst = arith.constant dense<0.000000e+00> : vector<128x64xf32>
    %2 = tpu.matmul %0, %1, %cst {dimension_numbers = #tpu.dot_dimension_numbers<[1], [0], [0], [1], [0, 0, 1, 1], [], []>} : vector<128x864xbf16>, vector<864x64xbf16>, vector<128x64xf32> -> vector<128x64xf32>
    %3 = arith.truncf %2 : vector<128x64xf32> to vector<128x64xbf16>
    %c0_3 = arith.constant 0 : index
    %c0_4 = arith.constant 0 : index
    %4 = vector.load %arg3[%c0_3, %c0_4] : memref<64x128xbf16, #tpu.memory_space<vmem>>, vector<64x128xbf16>
    %cst_5 = arith.constant dense<0.000000e+00> : vector<128x128xf32>
    %5 = tpu.matmul %3, %4, %cst_5 {dimension_numbers = #tpu.dot_dimension_numbers<[1], [0], [0], [1], [0, 0, 1, 1], [], []>} : vector<128x64xbf16>, vector<64x128xbf16>, vector<128x128xf32> -> vector<128x128xf32>
    %c0_6 = arith.constant 0 : index
    %c0_7 = arith.constant 0 : index
    %6 = vector.load %arg4[%c0_6, %c0_7] : memref<1x128xf32, #tpu.memory_space<vmem>>, vector<1x128xf32>
    %7 = vector.broadcast %6 : vector<1x128xf32> to vector<128x128xf32>
    %8 = arith.addf %5, %7 : vector<128x128xf32>
    %9 = arith.truncf %8 : vector<128x128xf32> to vector<128x128xbf16>
    %c0_8 = arith.constant 0 : index
    %c0_9 = arith.constant 0 : index
    %10 = vector.load %arg5[%c0_8, %c0_9] : memref<128x128xbf16, #tpu.memory_space<vmem>>, vector<128x128xbf16>
    tpu.vector_store %arg5[%c0_8, %c0_9], %9 {strides = array<i32>} : memref<128x128xbf16, #tpu.memory_space<vmem>>, vector<128x128xbf16>,
    return
  }
  func.func @transform_0(%arg0: i32) -> (i32, i32) {
    %c0_i32 = arith.constant 0 : i32
    %c0_i32_0 = arith.constant 0 : i32
    return %arg0, %c0_i32 : i32, i32
  }
  func.func @transform_1(%arg0: i32) -> (i32, i32) {
    %c0_i32 = arith.constant 0 : i32
    %c0_i32_0 = arith.constant 0 : i32
    %c0_i32_1 = arith.constant 0 : i32
    return %c0_i32, %c0_i32_0 : i32, i32
  }
  func.func @transform_2(%arg0: i32) -> (i32, i32) {
    %c0_i32 = arith.constant 0 : i32
    %c0_i32_0 = arith.constant 0 : i32
    %c0_i32_1 = arith.constant 0 : i32
    return %c0_i32, %c0_i32_0 : i32, i32
  }
  func.func @transform_3(%arg0: i32) -> (i32, i32) {
    %c0_i32 = arith.constant 0 : i32
    %c0_i32_0 = arith.constant 0 : i32
    %c0_i32_1 = arith.constant 0 : i32
    return %c0_i32, %c0_i32_0 : i32, i32
  }
  func.func @transform_4(%arg0: i32) -> (i32, i32) {
    %c0_i32 = arith.constant 0 : i32
    %c0_i32_0 = arith.constant 0 : i32
    return %arg0, %c0_i32 : i32, i32
  }
}

</mosaic_0001>

<llo_original>
// kernel: custom-call
$region0: #{custom-call}
  %s0 = inlined_call_operand.vmem [shape: u32[64,27], index: 0, kind: output, shape index: {}]

// kernel: squeeze.6
$region0: #{squeeze.6}
  %s0 = inlined_call_operand.vmem [shape: s32[1728], index: 0, kind: input, shape index: {}]
  %s1 = inlined_call_operand.vmem [shape: s32[64,27], index: 1, kind: output, shape index: {}]
  %v2 = vld [vmem:[%s0] sm:$0x1]
  %vm3 = vcmask 220160
  %4 = vst.msk [vmem:[%s1] sm:$0x1] %vm3, %v2
  %s5 = scalar_lea.vmem %s0, 4
  %v6 = vld [vmem:[%s5] sm:$0x1]
  %7 = vrot.lane.b32.xlu0 %v6, 127
  %v8 = vpop.permute.xlu0 %7
  %vm9 = vcmask 220160
  %s10 = scalar_lea.vmem %s1, 19
  %11 = vst.msk [vmem:[%s10] sm:$0x1] %vm9, %v8
  %s12 = scalar_lea.vmem %s0, 8
  %v13 = vld [vmem:[%s12] sm:$0x1]
  %14 = vrot.lane.b32.xlu0 %v13, 126
  %v15 = vpop.permute.xlu0 %14
  %vm16 = vcmask 220160
  %s17 = scalar_lea.vmem %s1, 38
  %18 = vst.msk [vmem:[%s17] sm:$0x1] %vm16, %v15
  %s19 = scalar_lea.vmem %s0, 12
  %v20 = vld [vmem:[%s19] sm:$0x1]
  %21 = vrot.lane.b32.xlu0 %v20, 125
  %v22 = vpop.permute.xlu0 %21
  %vm23 = vcmask 220160
  %s24 = scalar_lea.vmem %s1, 57
  %25 = vst.msk [vmem:[%s24] sm:$0x1] %vm23, %v22
  %s26 = scalar_lea.vmem %s0, 1
  %v27 = vld [vmem:[%s26] sm:$0x1]
  %28 = vrot.lane.b32.xlu0 %v27, 121
  %v29 = vpop.permute.xlu0 %28
  %vm30 = vcmask 220160
  %s31 = scalar_lea.vmem %s1, 5
  %32 = vst.msk [vmem:[%s31] sm:$0x1] %vm30, %v29
  %s33 = scalar_lea.vmem %s0, 5
  %v34 = vld [vmem:[%s33] sm:$0x1]
  %35 = vrot.lane.b32.xlu0 %v34, 120
  %v36 = vpop.permute.xlu0 %35
  %vm37 = vcmask 220160
  %s38 = scalar_lea.vmem %s1, 24
  %39 = vst.msk [vmem:[%s38] sm:$0x1] %vm37, %v36
  %s40 = scalar_lea.vmem %s0, 9
  %v41 = vld [vmem:[%s40] sm:$0x1]
  %42 = vrot.lane.b32.xlu0 %v41, 119
  %v43 = vpop.permute.xlu0 %42
  %vm44 = vcmask 220160
  %s45 = scalar_lea.vmem %s1, 43
  %46 = vst.msk [vmem:[%s45] sm:$0x1] %vm44, %v43
  %s47 = scalar_lea.vmem %s0, 13
  %v48 = vld [vmem:[%s47] sm:$0x1]
  %49 = vrot.lane.b32.xlu0 %v48, 118
  %v50 = vpop.permute.xlu0 %49
  %vm51 = vcmask 220160
  %s52 = scalar_lea.vmem %s1, 62
  %53 = vst.msk [vmem:[%s52] sm:$0x1] %vm51, %v50
  %s54 = scalar_lea.vmem %s0, 2
  %v55 = vld [vmem:[%s54] sm:$0x1]
  %56 = vrot.lane.b32.xlu0 %v55, 114
  %v57 = vpop.permute.xlu0 %56
  %vm58 = vcmask 220160
  %s59 = scalar_lea.vmem %s1, 10
  %60 = vst.msk [vmem:[%s59] sm:$0x1] %vm58, %v57
  %s61 = scalar_lea.vmem %s0, 6
  %v62 = vld [vmem:[%s61] sm:$0x1]
  %63 = vrot.lane.b32.xlu0 %v62, 113
  %v64 = vpop.permute.xlu0 %63
  %vm65 = vcmask 220160
  %s66 = scalar_lea.vmem %s1, 29
  %67 = vst.msk [vmem:[%s66] sm:$0x1] %vm65, %v64
  %s68 = scalar_lea.vmem %s0, 10
  %v69 = vld [vmem:[%s68] sm:$0x1]
  %70 = vrot.lane.b32.xlu0 %v69, 112
  %v71 = vpop.permute.xlu0 %70
  %vm72 = vcmask 220160
  %s73 = scalar_lea.vmem %s1, 48
  %74 = vst.msk [vmem:[%s73] sm:$0x1] %vm72, %v71
  %s75 = scalar_lea.vmem %s0, 3
  %v76 = vld [vmem:[%s75] sm:$0x1]
  %77 = vrot.lane.b32.xlu0 %v76, 107
  %v78 = vpop.permute.xlu0 %77
  %vm79 = vcmask 220160
  %s80 = scalar_lea.vmem %s1, 15
  %81 = vst.msk [vmem:[%s80] sm:$0x1] %vm79, %v78
  %s82 = scalar_lea.vmem %s0, 7
  %v83 = vld [vmem:[%s82] sm:$0x1]
  %84 = vrot.lane.b32.xlu0 %v83, 106
  %v85 = vpop.permute.xlu0 %84
  %vm86 = vcmask 220160
  %s87 = scalar_lea.vmem %s1, 34
  %88 = vst.msk [vmem:[%s87] sm:$0x1] %vm86, %v85
  %s89 = scalar_lea.vmem %s0, 11
  %v90 = vld [vmem:[%s89] sm:$0x1]
  %91 = vrot.lane.b32.xlu0 %v90, 105
  %v92 = vpop.permute.xlu0 %91
  %vm93 = vcmask 220160
  %s94 = scalar_lea.vmem %s1, 53
  %95 = vst.msk [vmem:[%s94] sm:$0x1] %vm93, %v92
  %v96 = vld [vmem:[%s0] sm:$0x1]
  %97 = vrot.lane.b32.xlu0 %v96, 101
  %v98 = vpop.permute.xlu0 %97
  %vm99 = vcmask 220160
  %s100 = scalar_lea.vmem %s1, 1
  %101 = vst.msk [vmem:[%s100] sm:$0x1] %vm99, %v98
  %s102 = scalar_lea.vmem %s0, 4
  %v103 = vld [vmem:[%s102] sm:$0x1]
  %104 = vrot.lane.b32.xlu0 %v103, 100
  %v105 = vpop.permute.xlu0 %104
  %vm106 = vcmask 220160
  %s107 = scalar_lea.vmem %s1, 20
  %108 = vst.msk [vmem:[%s107] sm:$0x1] %vm106, %v105
  %s109 = scalar_lea.vmem %s0, 8
  %v110 = vld [vmem:[%s109] sm:$0x1]
  %111 = vrot.lane.b32.xlu0 %v110, 99
  %v112 = vpop.permute.xlu0 %111
  %vm113 = vcmask 220160
  %s114 = scalar_lea.vmem %s1, 39
  %115 = vst.msk [vmem:[%s114] sm:$0x1] %vm113, %v112
  %s116 = scalar_lea.vmem %s0, 12
  %v117 = vld [vmem:[%s116] sm:$0x1]
  %118 = vrot.lane.b32.xlu0 %v117, 98
  %v119 = vpop.permute.xlu0 %118
  %vm120 = vcmask 220160
  %s121 = scalar_lea.vmem %s1, 58
  %122 = vst.msk [vmem:[%s121] sm:$0x1] %vm120, %v119
  %s123 = scalar_lea.vmem %s0, 1
  %v124 = vld [vmem:[%s123] sm:$0x1]
  %125 = vrot.lane.b32.xlu0 %v124, 94
  %v126 = vpop.permute.xlu0 %125
  %vm127 = vcmask 220160
  %s128 = scalar_lea.vmem %s1, 6
  %129 = vst.msk [vmem:[%s128] sm:$0x1] %vm127, %v126
  %s130 = scalar_lea.vmem %s0, 5
  %v131 = vld [vmem:[%s130] sm:$0x1]
  %132 = vrot.lane.b32.xlu0 %v131, 93
  %v133 = vpop.permute.xlu0 %132
  %vm134 = vcmask 220160
  %s135 = scalar_lea.vmem %s1, 25
  %136 = vst.msk [vmem:[%s135] sm:$0x1] %vm134, %v133
  %s137 = scalar_lea.vmem %s0, 9
  %v138 = vld [vmem:[%s137] sm:$0x1]
  %139 = vrot.lane.b32.xlu0 %v138, 92
  %v140 = vpop.permute.xlu0 %139
  %vm141 = vcmask 220160
  %s142 = scalar_lea.vmem %s1, 44
  %143 = vst.msk [vmem:[%s142] sm:$0x1] %vm141, %v140
  %s144 = scalar_lea.vmem %s0, 13
  %v145 = vld [vmem:[%s144] sm:$0x1]
  %146 = vrot.lane.b32.xlu0 %v145, 91
  %v147 = vpop.permute.xlu0 %146
  %vm148 = vcmask 220160
  %s149 = scalar_lea.vmem %s1, 63
  %150 = vst.msk [vmem:[%s149] sm:$0x1] %vm148, %v147
  %s151 = scalar_lea.vmem %s0, 2
  %v152 = vld [vmem:[%s151] sm:$0x1]
  %153 = vrot.lane.b32.xlu0 %v152, 87
  %v154 = vpop.permute.xlu0 %153
  %vm155 = vcmask 220160
  %s156 = scalar_lea.vmem %s1, 11
  %157 = vst.msk [vmem:[%s156] sm:$0x1] %vm155, %v154
  %s158 = scalar_lea.vmem %s0, 6
  %v159 = vld [vmem:[%s158] sm:$0x1]
  %160 = vrot.lane.b32.xlu0 %v159, 86
  %v161 = vpop.permute.xlu0 %160
  %vm162 = vcmask 220160
  %s163 = scalar_lea.vmem %s1, 30
  %164 = vst.msk [vmem:[%s163] sm:$0x1] %vm162, %v161
  %s165 = scalar_lea.vmem %s0, 10
  %v166 = vld [vmem:[%s165] sm:$0x1]
  %167 = vrot.lane.b32.xlu0 %v166, 85
  %v168 = vpop.permute.xlu0 %167
  %vm169 = vcmask 220160
  %s170 = scalar_lea.vmem %s1, 49
  %171 = vst.msk [vmem:[%s170] sm:$0x1] %vm169, %v168
  %s172 = scalar_lea.vmem %s0, 3
  %v173 = vld [vmem:[%s172] sm:$0x1]
  %174 = vrot.lane.b32.xlu0 %v173, 80
  %v175 = vpop.permute.xlu0 %174
  %vm176 = vcmask 220160
  %s177 = scalar_lea.vmem %s1, 16
  %178 = vst.msk [vmem:[%s177] sm:$0x1] %vm176, %v175
  %s179 = scalar_lea.vmem %s0, 7
  %v180 = vld [vmem:[%s179] sm:$0x1]
  %181 = vrot.lane.b32.xlu0 %v180, 79
  %v182 = vpop.permute.xlu0 %181
  %vm183 = vcmask 220160
  %s184 = scalar_lea.vmem %s1, 35
  %185 = vst.msk [vmem:[%s184] sm:$0x1] %vm183, %v182
  %s186 = scalar_lea.vmem %s0, 11
  %v187 = vld [vmem:[%s186] sm:$0x1]
  %188 = vrot.lane.b32.xlu0 %v187, 78
  %v189 = vpop.permute.xlu0 %188
  %vm190 = vcmask 220160
  %s191 = scalar_lea.vmem %s1, 54
  %192 = vst.msk [vmem:[%s191] sm:$0x1] %vm190, %v189
  %v193 = vld [vmem:[%s0] sm:$0x1]
  %194 = vrot.lane.b32.xlu0 %v193, 74
  %v195 = vpop.permute.xlu0 %194
  %vm196 = vcmask 220160
  %s197 = scalar_lea.vmem %s1, 2
  %198 = vst.msk [vmem:[%s197] sm:$0x1] %vm196, %v195
  %s199 = scalar_lea.vmem %s0, 4
  %v200 = vld [vmem:[%s199] sm:$0x1]
  %201 = vrot.lane.b32.xlu0 %v200, 73
  %v202 = vpop.permute.xlu0 %201
  %vm203 = vcmask 220160
  %s204 = scalar_lea.vmem %s1, 21
  %205 = vst.msk [vmem:[%s204] sm:$0x1] %vm203, %v202
  %s206 = scalar_lea.vmem %s0, 8
  %v207 = vld [vmem:[%s206] sm:$0x1]
  %208 = vrot.lane.b32.xlu0 %v207, 72
  %v209 = vpop.permute.xlu0 %208
  %vm210 = vcmask 220160
  %s211 = scalar_lea.vmem %s1, 40
  %212 = vst.msk [vmem:[%s211] sm:$0x1] %vm210, %v209
  %s213 = scalar_lea.vmem %s0, 12
  %v214 = vld [vmem:[%s213] sm:$0x1]
  %215 = vrot.lane.b32.xlu0 %v214, 71
  %v216 = vpop.permute.xlu0 %215
  %vm217 = vcmask 220160
  %s218 = scalar_lea.vmem %s1, 59
  %219 = vst.msk [vmem:[%s218] sm:$0x1] %vm217, %v216
  %s220 = scalar_lea.vmem %s0, 1
  %v221 = vld [vmem:[%s220] sm:$0x1]
  %222 = vrot.lane.b32.xlu0 %v221, 67
  %v223 = vpop.permute.xlu0 %222
  %vm224 = vcmask 220160
  %s225 = scalar_lea.vmem %s1, 7
  %226 = vst.msk [vmem:[%s225] sm:$0x1] %vm224, %v223
  %s227 = scalar_lea.vmem %s0, 5
  %v228 = vld [vmem:[%s227] sm:$0x1]
  %229 = vrot.lane.b32.xlu0 %v228, 66
  %v230 = vpop.permute.xlu0 %229
  %vm231 = vcmask 220160
  %s232 = scalar_lea.vmem %s1, 26
  %233 = vst.msk [vmem:[%s232] sm:$0x1] %vm231, %v230
  %s234 = scalar_lea.vmem %s0, 9
  %v235 = vld [vmem:[%s234] sm:$0x1]
  %236 = vrot.lane.b32.xlu0 %v235, 65
  %v237 = vpop.permute.xlu0 %236
  %vm238 = vcmask 220160
  %s239 = scalar_lea.vmem %s1, 45
  %240 = vst.msk [vmem:[%s239] sm:$0x1] %vm238, %v237
  %s241 = scalar_lea.vmem %s0, 2
  %v242 = vld [vmem:[%s241] sm:$0x1]
  %243 = vrot.lane.b32.xlu0 %v242, 60
  %v244 = vpop.permute.xlu0 %243
  %vm245 = vcmask 220160
  %s246 = scalar_lea.vmem %s1, 12
  %247 = vst.msk [vmem:[%s246] sm:$0x1] %vm245, %v244
  %s248 = scalar_lea.vmem %s0, 6
  %v249 = vld [vmem:[%s248] sm:$0x1]
  %250 = vrot.lane.b32.xlu0 %v249, 59
  %v251 = vpop.permute.xlu0 %250
  %vm252 = vcmask 220160
  %s253 = scalar_lea.vmem %s1, 31
  %254 = vst.msk [vmem:[%s253] sm:$0x1] %vm252, %v251
  %s255 = scalar_lea.vmem %s0, 10
  %v256 = vld [vmem:[%s255] sm:$0x1]
  %257 = vrot.lane.b32.xlu0 %v256, 58
  %v258 = vpop.permute.xlu0 %257
  %vm259 = vcmask 220160
  %s260 = scalar_lea.vmem %s1, 50
  %261 = vst.msk [vmem:[%s260] sm:$0x1] %vm259, %v258
  %s262 = scalar_lea.vmem %s0, 3
  %v263 = vld [vmem:[%s262] sm:$0x1]
  %264 = vrot.lane.b32.xlu0 %v263, 53
  %v265 = vpop.permute.xlu0 %264
  %vm266 = vcmask 220160
  %s267 = scalar_lea.vmem %s1, 17
  %268 = vst.msk [vmem:[%s267] sm:$0x1] %vm266, %v265
  %s269 = scalar_lea.vmem %s0, 7
  %v270 = vld [vmem:[%s269] sm:$0x1]
  %271 = vrot.lane.b32.xlu0 %v270, 52
  %v272 = vpop.permute.xlu0 %271
  %vm273 = vcmask 220160
  %s274 = scalar_lea.vmem %s1, 36
  %275 = vst.msk [vmem:[%s274] sm:$0x1] %vm273, %v272
  %s276 = scalar_lea.vmem %s0, 11
  %v277 = vld [vmem:[%s276] sm:$0x1]
  %278 = vrot.lane.b32.xlu0 %v277, 51
  %v279 = vpop.permute.xlu0 %278
  %vm280 = vcmask 220160
  %s281 = scalar_lea.vmem %s1, 55
  %282 = vst.msk [vmem:[%s281] sm:$0x1] %vm280, %v279
  %v283 = vld [vmem:[%s0] sm:$0x1]
  %284 = vrot.lane.b32.xlu0 %v283, 47
  %v285 = vpop.permute.xlu0 %284
  %vm286 = vcmask 220160
  %s287 = scalar_lea.vmem %s1, 3
  %288 = vst.msk [vmem:[%s287] sm:$0x1] %vm286, %v285
  %s289 = scalar_lea.vmem %s0, 4
  %v290 = vld [vmem:[%s289] sm:$0x1]
  %291 = vrot.lane.b32.xlu0 %v290, 46
  %v292 = vpop.permute.xlu0 %291
  %vm293 = vcmask 220160
  %s294 = scalar_lea.vmem %s1, 22
  %295 = vst.msk [vmem:[%s294] sm:$0x1] %vm293, %v292
  %s296 = scalar_lea.vmem %s0, 8
  %v297 = vld [vmem:[%s296] sm:$0x1]
  %298 = vrot.lane.b32.xlu0 %v297, 45
  %v299 = vpop.permute.xlu0 %298
  %vm300 = vcmask 220160
  %s301 = scalar_lea.vmem %s1, 41
  %302 = vst.msk [vmem:[%s301] sm:$0x1] %vm300, %v299
  %s303 = scalar_lea.vmem %s0, 12
  %v304 = vld [vmem:[%s303] sm:$0x1]
  %305 = vrot.lane.b32.xlu0 %v304, 44
  %v306 = vpop.permute.xlu0 %305
  %vm307 = vcmask 220160
  %s308 = scalar_lea.vmem %s1, 60
  %309 = vst.msk [vmem:[%s308] sm:$0x1] %vm307, %v306
  %s310 = scalar_lea.vmem %s0, 1
  %v311 = vld [vmem:[%s310] sm:$0x1]
  %312 = vrot.lane.b32.xlu0 %v311, 40
  %v313 = vpop.permute.xlu0 %312
  %vm314 = vcmask 220160
  %s315 = scalar_lea.vmem %s1, 8
  %316 = vst.msk [vmem:[%s315] sm:$0x1] %vm314, %v313
  %s317 = scalar_lea.vmem %s0, 5
  %v318 = vld [vmem:[%s317] sm:$0x1]
  %319 = vrot.lane.b32.xlu0 %v318, 39
  %v320 = vpop.permute.xlu0 %319
  %vm321 = vcmask 220160
  %s322 = scalar_lea.vmem %s1, 27
  %323 = vst.msk [vmem:[%s322] sm:$0x1] %vm321, %v320
  %s324 = scalar_lea.vmem %s0, 9
  %v325 = vld [vmem:[%s324] sm:$0x1]
  %326 = vrot.lane.b32.xlu0 %v325, 38
  %v327 = vpop.permute.xlu0 %326
  %vm328 = vcmask 220160
  %s329 = scalar_lea.vmem %s1, 46
  %330 = vst.msk [vmem:[%s329] sm:$0x1] %vm328, %v327
  %s331 = scalar_lea.vmem %s0, 2
  %v332 = vld [vmem:[%s331] sm:$0x1]
  %333 = vrot.lane.b32.xlu0 %v332, 33
  %v334 = vpop.permute.xlu0 %333
  %vm335 = vcmask 220160
  %s336 = scalar_lea.vmem %s1, 13
  %337 = vst.msk [vmem:[%s336] sm:$0x1] %vm335, %v334
  %s338 = scalar_lea.vmem %s0, 6
  %v339 = vld [vmem:[%s338] sm:$0x1]
  %340 = vrot.lane.b32.xlu0 %v339, 32
  %v341 = vpop.permute.xlu0 %340
  %vm342 = vcmask 220160
  %s343 = scalar_lea.vmem %s1, 32
  %344 = vst.msk [vmem:[%s343] sm:$0x1] %vm342, %v341
  %s345 = scalar_lea.vmem %s0, 10
  %v346 = vld [vmem:[%s345] sm:$0x1]
  %347 = vrot.lane.b32.xlu0 %v346, 31
  %v348 = vpop.permute.xlu0 %347
  %vm349 = vcmask 220160
  %s350 = scalar_lea.vmem %s1, 51
  %351 = vst.msk [vmem:[%s350] sm:$0x1] %vm349, %v348
  %s352 = scalar_lea.vmem %s0, 3
  %v353 = vld [vmem:[%s352] sm:$0x1]
  %s354 = scalar_lea.vmem %s0, 4
  %v355 = vld [vmem:[%s354] sm:$0x1]
  %vm356 = vcmask 834560
  %v357 = vsel %vm356, %v355, %v353
  %358 = vrot.lane.b32.xlu0 %v357, 26
  %v359 = vpop.permute.xlu0 %358
  %vm360 = vcmask 211968
  %s361 = scalar_lea.vmem %s1, 18
  %362 = vst.msk [vmem:[%s361] sm:$0x1] %vm360, %v359
  %vm363 = vcmask 220368
  %s364 = scalar_lea.vmem %s1, 18
  %365 = vst.msk [vmem:[%s364] sm:$0x1] %vm363, %v359
  %s366 = scalar_lea.vmem %s0, 7
  %v367 = vld [vmem:[%s366] sm:$0x1]
  %s368 = scalar_lea.vmem %s0, 8
  %v369 = vld [vmem:[%s368] sm:$0x1]
  %vm370 = vcmask 842752
  %v371 = vsel %vm370, %v369, %v367
  %372 = vrot.lane.b32.xlu0 %v371, 25
  %v373 = vpop.permute.xlu0 %372
  %vm374 = vcmask 203776
  %s375 = scalar_lea.vmem %s1, 37
  %376 = vst.msk [vmem:[%s375] sm:$0x1] %vm374, %v373
  %vm377 = vcmask 220360
  %s378 = scalar_lea.vmem %s1, 37
  %379 = vst.msk [vmem:[%s378] sm:$0x1] %vm377, %v373
  %s380 = scalar_lea.vmem %s0, 11
  %v381 = vld [vmem:[%s380] sm:$0x1]
  %s382 = scalar_lea.vmem %s0, 12
  %v383 = vld [vmem:[%s382] sm:$0x1]
  %vm384 = vcmask 850944
  %v385 = vsel %vm384, %v383, %v381
  %386 = vrot.lane.b32.xlu0 %v385, 24
  %v387 = vpop.permute.xlu0 %386
  %vm388 = vcmask 195584
  %s389 = scalar_lea.vmem %s1, 56
  %390 = vst.msk [vmem:[%s389] sm:$0x1] %vm388, %v387
  %vm391 = vcmask 220352
  %s392 = scalar_lea.vmem %s1, 56
  %393 = vst.msk [vmem:[%s392] sm:$0x1] %vm391, %v387
  %v394 = vld [vmem:[%s0] sm:$0x1]
  %s395 = scalar_lea.vmem %s0, 1
  %v396 = vld [vmem:[%s395] sm:$0x1]
  %vm397 = vcmask 883712
  %v398 = vsel %vm397, %v396, %v394
  %399 = vrot.lane.b32.xlu0 %v398, 20
  %v400 = vpop.permute.xlu0 %399
  %vm401 = vcmask 162816
  %s402 = scalar_lea.vmem %s1, 4
  %403 = vst.msk [vmem:[%s402] sm:$0x1] %vm401, %v400
  %vm404 = vcmask 220320
  %s405 = scalar_lea.vmem %s1, 4
  %406 = vst.msk [vmem:[%s405] sm:$0x1] %vm404, %v400
  %s407 = scalar_lea.vmem %s0, 4
  %v408 = vld [vmem:[%s407] sm:$0x1]
  %s409 = scalar_lea.vmem %s0, 5
  %v410 = vld [vmem:[%s409] sm:$0x1]
  %vm411 = vcmask 891904
  %v412 = vsel %vm411, %v410, %v408
  %413 = vrot.lane.b32.xlu0 %v412, 19
  %v414 = vpop.permute.xlu0 %413
  %vm415 = vcmask 154624
  %s416 = scalar_lea.vmem %s1, 23
  %417 = vst.msk [vmem:[%s416] sm:$0x1] %vm415, %v414
  %vm418 = vcmask 220312
  %s419 = scalar_lea.vmem %s1, 23
  %420 = vst.msk [vmem:[%s419] sm:$0x1] %vm418, %v414
  %s421 = scalar_lea.vmem %s0, 8
  %v422 = vld [vmem:[%s421] sm:$0x1]
  %s423 = scalar_lea.vmem %s0, 9
  %v424 = vld [vmem:[%s423] sm:$0x1]
  %vm425 = vcmask 900096
  %v426 = vsel %vm425, %v424, %v422
  %427 = vrot.lane.b32.xlu0 %v426, 18
  %v428 = vpop.permute.xlu0 %427
  %vm429 = vcmask 146432
  %s430 = scalar_lea.vmem %s1, 42
  %431 = vst.msk [vmem:[%s430] sm:$0x1] %vm429, %v428
  %vm432 = vcmask 220304
  %s433 = scalar_lea.vmem %s1, 42
  %434 = vst.msk [vmem:[%s433] sm:$0x1] %vm432, %v428
  %s435 = scalar_lea.vmem %s0, 12
  %v436 = vld [vmem:[%s435] sm:$0x1]
  %s437 = scalar_lea.vmem %s0, 13
  %v438 = vld [vmem:[%s437] sm:$0x1]
  %vm439 = vcmask 908288
  %v440 = vsel %vm439, %v438, %v436
  %441 = vrot.lane.b32.xlu0 %v440, 17
  %v442 = vpop.permute.xlu0 %441
  %vm443 = vcmask 138240
  %s444 = scalar_lea.vmem %s1, 61
  %445 = vst.msk [vmem:[%s444] sm:$0x1] %vm443, %v442
  %vm446 = vcmask 220296
  %s447 = scalar_lea.vmem %s1, 61
  %448 = vst.msk [vmem:[%s447] sm:$0x1] %vm446, %v442
  %s449 = scalar_lea.vmem %s0, 1
  %v450 = vld [vmem:[%s449] sm:$0x1]
  %s451 = scalar_lea.vmem %s0, 2
  %v452 = vld [vmem:[%s451] sm:$0x1]
  %vm453 = vcmask 941056
  %v454 = vsel %vm453, %v452, %v450
  %455 = vrot.lane.b32.xlu0 %v454, 13
  %v456 = vpop.permute.xlu0 %455
  %vm457 = vcmask 105472
  %s458 = scalar_lea.vmem %s1, 9
  %459 = vst.msk [vmem:[%s458] sm:$0x1] %vm457, %v456
  %vm460 = vcmask 220264
  %s461 = scalar_lea.vmem %s1, 9
  %462 = vst.msk [vmem:[%s461] sm:$0x1] %vm460, %v456
  %s463 = scalar_lea.vmem %s0, 5
  %v464 = vld [vmem:[%s463] sm:$0x1]
  %s465 = scalar_lea.vmem %s0, 6
  %v466 = vld [vmem:[%s465] sm:$0x1]
  %vm467 = vcmask 949248
  %v468 = vsel %vm467, %v466, %v464
  %469 = vrot.lane.b32.xlu0 %v468, 12
  %v470 = vpop.permute.xlu0 %469
  %vm471 = vcmask 97280
  %s472 = scalar_lea.vmem %s1, 28
  %473 = vst.msk [vmem:[%s472] sm:$0x1] %vm471, %v470
  %vm474 = vcmask 220256
  %s475 = scalar_lea.vmem %s1, 28
  %476 = vst.msk [vmem:[%s475] sm:$0x1] %vm474, %v470
  %s477 = scalar_lea.vmem %s0, 9
  %v478 = vld [vmem:[%s477] sm:$0x1]
  %s479 = scalar_lea.vmem %s0, 10
  %v480 = vld [vmem:[%s479] sm:$0x1]
  %vm481 = vcmask 957440
  %v482 = vsel %vm481, %v480, %v478
  %483 = vrot.lane.b32.xlu0 %v482, 11
  %v484 = vpop.permute.xlu0 %483
  %vm485 = vcmask 89088
  %s486 = scalar_lea.vmem %s1, 47
  %487 = vst.msk [vmem:[%s486] sm:$0x1] %vm485, %v484
  %vm488 = vcmask 220248
  %s489 = scalar_lea.vmem %s1, 47
  %490 = vst.msk [vmem:[%s489] sm:$0x1] %vm488, %v484
  %s491 = scalar_lea.vmem %s0, 2
  %v492 = vld [vmem:[%s491] sm:$0x1]
  %s493 = scalar_lea.vmem %s0, 3
  %v494 = vld [vmem:[%s493] sm:$0x1]
  %vm495 = vcmask 998400
  %v496 = vsel %vm495, %v494, %v492
  %497 = vrot.lane.b32.xlu0 %v496, 6
  %v498 = vpop.permute.xlu0 %497
  %vm499 = vcmask 48128
  %s500 = scalar_lea.vmem %s1, 14
  %501 = vst.msk [vmem:[%s500] sm:$0x1] %vm499, %v498
  %vm502 = vcmask 220208
  %s503 = scalar_lea.vmem %s1, 14
  %504 = vst.msk [vmem:[%s503] sm:$0x1] %vm502, %v498
  %s505 = scalar_lea.vmem %s0, 6
  %v506 = vld [vmem:[%s505] sm:$0x1]
  %s507 = scalar_lea.vmem %s0, 7
  %v508 = vld [vmem:[%s507] sm:$0x1]
  %vm509 = vcmask 1006592
  %v510 = vsel %vm509, %v508, %v506
  %511 = vrot.lane.b32.xlu0 %v510, 5
  %v512 = vpop.permute.xlu0 %511
  %vm513 = vcmask 39936
  %s514 = scalar_lea.vmem %s1, 33
  %515 = vst.msk [vmem:[%s514] sm:$0x1] %vm513, %v512
  %vm516 = vcmask 220200
  %s517 = scalar_lea.vmem %s1, 33
  %518 = vst.msk [vmem:[%s517] sm:$0x1] %vm516, %v512
  %s519 = scalar_lea.vmem %s0, 10
  %v520 = vld [vmem:[%s519] sm:$0x1]
  %s521 = scalar_lea.vmem %s0, 11
  %v522 = vld [vmem:[%s521] sm:$0x1]
  %vm523 = vcmask 1014784
  %v524 = vsel %vm523, %v522, %v520
  %525 = vrot.lane.b32.xlu0 %v524, 4
  %v526 = vpop.permute.xlu0 %525
  %vm527 = vcmask 31744
  %s528 = scalar_lea.vmem %s1, 52
  %529 = vst.msk [vmem:[%s528] sm:$0x1] %vm527, %v526
  %vm530 = vcmask 220192
  %s531 = scalar_lea.vmem %s1, 52
  %532 = vst.msk [vmem:[%s531] sm:$0x1] %vm530, %v526

// kernel: sparse_segmentation_net.3
$region0: #{sparse_segmentation_net.3}
  #allocation0 [shape = 'u32[]', space=smem, size = 0x4, offset = 0x4, fixed_abs, tag = 'smem constant byte address 0x4 - core index']
  #allocation1 [shape = 'u32[144,128]{1,0:T(1,128)}', space=vmem, size = 0x12000, scoped, tag = 'internal scratch']
  %s0 = inlined_call_operand.vmem [shape: bf16[128,27], index: 0, kind: input, shape index: {}]
  %s1 = inlined_call_operand.vmem [shape: bf16[27,16], index: 1, kind: input, shape index: {}]
  %s2 = inlined_call_operand.vmem [shape: bf16[128,16], index: 2, kind: output, shape index: {}]
  %s3 = sld [smem:[#allocation0]]
  $region18: #{sparse_segmentation_net.3} parent=0
    _
  %s5 = ssub.s32 1, %s3
  %s6 = scalar_select 0, %s5, %s3
  // Predicated region
  $region2: #{sparse_segmentation_net.3} parent=0 // pred_check
    _
  $region3: #{sparse_segmentation_net.3} parent=0 // pred_check_branch
    %8 = sbr.rel (0) target = $region5
  $region4: #{sparse_segmentation_net.3} parent=0 // pred_region
    _
  $region5: #{sparse_segmentation_net.3} parent=0 // pred_fallthru
    _
  // Predicated region
  $region6: #{sparse_segmentation_net.3} parent=0 // pred_check
    _
  $region7: #{sparse_segmentation_net.3} parent=0 // pred_check_branch
    %10 = sbr.rel (0) target = $region9
  $region8: #{sparse_segmentation_net.3} parent=0 // pred_region
    _
  $region9: #{sparse_segmentation_net.3} parent=0 // pred_fallthru
    _
  %v12 = vld [vmem:[%s0] sm:$0xf]
  %v13 = vld [vmem:[%s0 + $0x4] sm:$0xf]
  %v14 = vld [vmem:[%s0 + $0x8] sm:$0xf]
  %v15 = vld [vmem:[%s0 + $0xc] sm:$0xf]
  %v16 = vld [vmem:[%s0 + $0x10] sm:$0xf]
  %v17 = vld [vmem:[%s0 + $0x14] sm:$0xf]
  %v18 = vld [vmem:[%s0 + $0x18] sm:$0xf]
  %v19 = vld [vmem:[%s0 + $0x1c] sm:$0xf]
  %v20 = vld [vmem:[%s0 + $0x20] sm:$0xf]
  %v21 = vld [vmem:[%s0 + $0x24] sm:$0xf]
  %v22 = vld [vmem:[%s0 + $0x28] sm:$0xf]
  %v23 = vld [vmem:[%s0 + $0x2c] sm:$0xf]
  %v24 = vld [vmem:[%s0 + $0x30] sm:$0xf]
  %v25 = vld [vmem:[%s0 + $0x34] sm:$0xf]
  %v26 = vld [vmem:[%s0 + $0x38] sm:$0xf]
  %v27 = vld [vmem:[%s0 + $0x3c] sm:$0xf]
  %v28 = vld [vmem:[%s1] sm:$0xf]
  %v29 = vld [vmem:[%s1 + $0x4] sm:$0xf]
  %v30 = vld [vmem:[%s1 + $0x8] sm:$0xf]
  %v31 = vld [vmem:[%s1 + $0xc] sm:$0x3]
  %v48 = vunpack.c.l.b16 %v12
  %v49 = vunpack.c.l.b16 %v13
  %v50 = vunpack.c.l.b16 %v14
  %v51 = vunpack.c.l.b16 %v15
  %v52 = vunpack.c.l.b16 %v16
  %v53 = vunpack.c.l.b16 %v17
  %v54 = vunpack.c.l.b16 %v18
  %v55 = vunpack.c.l.b16 %v19
  %v56 = vunpack.c.l.b16 %v20
  %v57 = vunpack.c.l.b16 %v21
  %v58 = vunpack.c.l.b16 %v22
  %v59 = vunpack.c.l.b16 %v23
  %v60 = vunpack.c.l.b16 %v24
  %v61 = vunpack.c.l.b16 %v25
  %v62 = vunpack.c.l.b16 %v26
  %v63 = vunpack.c.l.b16 %v27
  %v64 = vpack.c.b16 %v49, %v48
  %v65 = vpack.c.b16 %v51, %v50
  %v66 = vpack.c.b16 %v53, %v52
  %v67 = vpack.c.b16 %v55, %v54
  %v68 = vpack.c.b16 %v57, %v56
  %v69 = vpack.c.b16 %v59, %v58
  %v70 = vpack.c.b16 %v61, %v60
  %v71 = vpack.c.b16 %v63, %v62
  %v76 = vunpack.c.l.b16 %v28
  %v77 = vunpack.c.l.b16 %v29
  %v78 = vunpack.c.l.b16 %v30
  %v79 = vunpack.c.l.b16 %v31
  %v80 = vpack.c.b16 %v77, %v76
  %v81 = vpack.c.b16 %v79, %v78
  %vm83 = vcmask 220160
  %v85 = vsel %vm83, %v64, 0
  %v88 = vsel %vm83, %v65, 0
  %v91 = vsel %vm83, %v66, 0
  %v94 = vsel %vm83, %v67, 0
  %v97 = vsel %vm83, %v68, 0
  %v100 = vsel %vm83, %v69, 0
  %v103 = vsel %vm83, %v70, 0
  %v106 = vsel %vm83, %v71, 0
  %vm108 = vcmask 1044480
  %vm109 = vcmask 1045504
  %v110 = vsel %vm108, 4294967295, 65535
  %v111 = vsel %vm109, %v110, 0
  %v113 = vand.u32 %v81, %v111
  %115 = vmatprep.subr.bf16.mxu0 0
  %116 = vmatpush1.bf16.msra.mxu0 0
  %117 = vmatprep.subr.bf16.mxu0 0
  %118 = vmatpush1.bf16.msra.mxu0 0
  %119 = vmatprep.subr.bf16.mxu0 0
  %120 = vmatpush1.bf16.msra.mxu0 0
  %121 = vmatprep.subr.bf16.mxu0 0
  %122 = vmatpush1.bf16.msra.mxu0 0
  %123 = vmatprep.subr.bf16.mxu0 0
  %124 = vmatpush1.bf16.msra.mxu0 0
  %125 = vmatprep.subr.bf16.mxu0 0
  %126 = vmatpush1.bf16.msra.mxu0 0
  %127 = vmatprep.subr.bf16.mxu0 0
  %128 = vmatpush1.bf16.msra.mxu0 %v113
  %129 = vmatprep.subr.bf16.mxu0 0
  %130 = vmatpush1.bf16.msra.mxu0 %v80
  %131 = vmatprep.subr.bf16.mxu0 0
  %132 = vmatpush2.bf16.msra.mxu0 0
  %133 = vmatprep.subr.bf16.mxu0 0
  %134 = vmatpush2.bf16.msra.mxu0 0
  %135 = vmatprep.subr.bf16.mxu0 0
  %136 = vmatpush2.bf16.msra.mxu0 0
  %137 = vmatprep.subr.bf16.mxu0 0
  %138 = vmatpush2.bf16.msra.mxu0 0
  %139 = vmatprep.subr.bf16.mxu0 0
  %140 = vmatpush2.bf16.msra.mxu0 0
  %141 = vmatprep.subr.bf16.mxu0 0
  %142 = vmatpush2.bf16.msra.mxu0 0
  %143 = vmatprep.subr.bf16.mxu0 0
  %144 = vmatpush2.bf16.msra.mxu0 0
  %145 = vmatprep.subr.bf16.mxu0 0
  %146 = vmatpush2.bf16.msra.mxu0 0
  %147 = vmatprep.mubr.bf16.mxu0 0
  %148 = vmatmul.mubr.bf16.gmra.mxu0 %v85
  %v149 = vpop.f32.mrf.mxu0
  %v150 = vadd.f32 0.0, %v149
  %v151 = vpop.f32.mrf.mxu0
  %v152 = vpop.f32.mrf.mxu0
  %v153 = vadd.f32 0.0, %v152
  %v154 = vpop.f32.mrf.mxu0
  %155 = vmatprep.mubr.bf16.mxu0 0
  %156 = vmatmul.mubr.bf16.gmra.mxu0 %v88
  %v157 = vpop.f32.mrf.mxu0
  %v158 = vadd.f32 0.0, %v157
  %v159 = vpop.f32.mrf.mxu0
  %v160 = vpop.f32.mrf.mxu0
  %v161 = vadd.f32 0.0, %v160
  %v162 = vpop.f32.mrf.mxu0
  %163 = vmatprep.mubr.bf16.mxu0 0
  %164 = vmatmul.mubr.bf16.gmra.mxu0 %v91
  %v165 = vpop.f32.mrf.mxu0
  %v166 = vadd.f32 0.0, %v165
  %v167 = vpop.f32.mrf.mxu0
  %v168 = vpop.f32.mrf.mxu0
  %v169 = vadd.f32 0.0, %v168
  %v170 = vpop.f32.mrf.mxu0
  %171 = vmatprep.mubr.bf16.mxu0 0
  %172 = vmatmul.mubr.bf16.gmra.mxu0 %v94
  %v173 = vpop.f32.mrf.mxu0
  %v174 = vadd.f32 0.0, %v173
  %v175 = vpop.f32.mrf.mxu0
  %v176 = vpop.f32.mrf.mxu0
  %v177 = vadd.f32 0.0, %v176
  %v178 = vpop.f32.mrf.mxu0
  %179 = vmatprep.mubr.bf16.mxu0 0
  %180 = vmatmul.mubr.bf16.gmra.mxu0 %v97
  %v181 = vpop.f32.mrf.mxu0
  %v182 = vadd.f32 0.0, %v181
  %v183 = vpop.f32.mrf.mxu0
  %v184 = vpop.f32.mrf.mxu0
  %v185 = vadd.f32 0.0, %v184
  %v186 = vpop.f32.mrf.mxu0
  %187 = vmatprep.mubr.bf16.mxu0 0
  %188 = vmatmul.mubr.bf16.gmra.mxu0 %v100
  %v189 = vpop.f32.mrf.mxu0
  %v190 = vadd.f32 0.0, %v189
  %v191 = vpop.f32.mrf.mxu0
  %v192 = vpop.f32.mrf.mxu0
  %v193 = vadd.f32 0.0, %v192
  %v194 = vpop.f32.mrf.mxu0
  %195 = vmatprep.mubr.bf16.mxu0 0
  %196 = vmatmul.mubr.bf16.gmra.mxu0 %v103
  %v197 = vpop.f32.mrf.mxu0
  %v198 = vadd.f32 0.0, %v197
  %v199 = vpop.f32.mrf.mxu0
  %v200 = vpop.f32.mrf.mxu0
  %v201 = vadd.f32 0.0, %v200
  %v202 = vpop.f32.mrf.mxu0
  %203 = vmatprep.mubr.bf16.mxu0 0
  %204 = vmatmul.mubr.bf16.gmra.mxu0 %v106
  %v205 = vpop.f32.mrf.mxu0
  %v206 = vadd.f32 0.0, %v205
  %v207 = vpop.f32.mrf.mxu0
  %v208 = vpop.f32.mrf.mxu0
  %v209 = vadd.f32 0.0, %v208
  %v210 = vpop.f32.mrf.mxu0
  %211 = vdwg.mxu0
  %v212 = vpack.c.bf16 %v153, %v150
  %v213 = vpack.c.bf16 %v161, %v158
  %v214 = vpack.c.bf16 %v169, %v166
  %v215 = vpack.c.bf16 %v177, %v174
  %v216 = vpack.c.bf16 %v185, %v182
  %v217 = vpack.c.bf16 %v193, %v190
  %v218 = vpack.c.bf16 %v201, %v198
  %v219 = vpack.c.bf16 %v209, %v206
  %v228 = vunpack.c.l.b16 %v212
  %v229 = vunpack.c.h.b16 %v212
  %v230 = vunpack.c.l.b16 %v213
  %v231 = vunpack.c.h.b16 %v213
  %v232 = vunpack.c.l.b16 %v214
  %v233 = vunpack.c.h.b16 %v214
  %v234 = vunpack.c.l.b16 %v215
  %v235 = vunpack.c.h.b16 %v215
  %v236 = vunpack.c.l.b16 %v216
  %v237 = vunpack.c.h.b16 %v216
  %v238 = vunpack.c.l.b16 %v217
  %v239 = vunpack.c.h.b16 %v217
  %v240 = vunpack.c.l.b16 %v218
  %v241 = vunpack.c.h.b16 %v218
  %v242 = vunpack.c.l.b16 %v219
  %v243 = vunpack.c.h.b16 %v219
  %v244 = vpack.c.b16 %v228, %v228
  %v245 = vpack.c.b16 %v229, %v229
  %v246 = vpack.c.b16 %v230, %v230
  %v247 = vpack.c.b16 %v231, %v231
  %v248 = vpack.c.b16 %v232, %v232
  %v249 = vpack.c.b16 %v233, %v233
  %v250 = vpack.c.b16 %v234, %v234
  %v251 = vpack.c.b16 %v235, %v235
  %v252 = vpack.c.b16 %v236, %v236
  %v253 = vpack.c.b16 %v237, %v237
  %v254 = vpack.c.b16 %v238, %v238
  %v255 = vpack.c.b16 %v239, %v239
  %v256 = vpack.c.b16 %v240, %v240
  %v257 = vpack.c.b16 %v241, %v241
  %v258 = vpack.c.b16 %v242, %v242
  %v259 = vpack.c.b16 %v243, %v243
  %vm276 = vcmask 125952
  %277 = vst.msk [vmem:[%s2] sm:$0xf] %vm276, %v244
  %278 = vst.msk [vmem:[%s2 + $0x4] sm:$0xf] %vm276, %v245
  %279 = vst.msk [vmem:[%s2 + $0x8] sm:$0xf] %vm276, %v246
  %280 = vst.msk [vmem:[%s2 + $0xc] sm:$0xf] %vm276, %v247
  %281 = vst.msk [vmem:[%s2 + $0x10] sm:$0xf] %vm276, %v248
  %282 = vst.msk [vmem:[%s2 + $0x14] sm:$0xf] %vm276, %v249
  %283 = vst.msk [vmem:[%s2 + $0x18] sm:$0xf] %vm276, %v250
  %284 = vst.msk [vmem:[%s2 + $0x1c] sm:$0xf] %vm276, %v251
  %285 = vst.msk [vmem:[%s2 + $0x20] sm:$0xf] %vm276, %v252
  %286 = vst.msk [vmem:[%s2 + $0x24] sm:$0xf] %vm276, %v253
  %287 = vst.msk [vmem:[%s2 + $0x28] sm:$0xf] %vm276, %v254
  %288 = vst.msk [vmem:[%s2 + $0x2c] sm:$0xf] %vm276, %v255
  %289 = vst.msk [vmem:[%s2 + $0x30] sm:$0xf] %vm276, %v256
  %290 = vst.msk [vmem:[%s2 + $0x34] sm:$0xf] %vm276, %v257
  %291 = vst.msk [vmem:[%s2 + $0x38] sm:$0xf] %vm276, %v258
  %292 = vst.msk [vmem:[%s2 + $0x3c] sm:$0xf] %vm276, %v259
  // Predicated region
  $region10: #{sparse_segmentation_net.3} parent=0 // pred_check
    _
  $region11: #{sparse_segmentation_net.3} parent=0 // pred_check_branch
    %294 = sbr.rel (0) target = $region13
  $region12: #{sparse_segmentation_net.3} parent=0 // pred_region
    _
  $region13: #{sparse_segmentation_net.3} parent=0 // pred_fallthru
    _
  // Predicated region
  $region14: #{sparse_segmentation_net.3} parent=0 // pred_check
    _
  $region15: #{sparse_segmentation_net.3} parent=0 // pred_check_branch
    %296 = sbr.rel (0) target = $region17
  $region16: #{sparse_segmentation_net.3} parent=0 // pred_region
    _
  $region17: #{sparse_segmentation_net.3} parent=0 // pred_fallthru
    _

// kernel: sparse_segmentation_net.4
$region0: #{sparse_segmentation_net.4}
  #allocation0 [shape = 'u32[]', space=smem, size = 0x4, offset = 0x4, fixed_abs, tag = 'smem constant byte address 0x4 - core index']
  #allocation1 [shape = 'u32[144,128]{1,0:T(1,128)}', space=vmem, size = 0x12000, scoped, tag = 'internal scratch']
  %s0 = inlined_call_operand.vmem [shape: bf16[128,432], index: 0, kind: input, shape index: {}]
  %s1 = inlined_call_operand.vmem [shape: bf16[432,32], index: 1, kind: input, shape index: {}]
  %s2 = inlined_call_operand.vmem [shape: bf16[128,32], index: 2, kind: output, shape index: {}]
  %s3 = sld [smem:[#allocation0]]
  $region18: #{sparse_segmentation_net.4} parent=0
    _
  %s5 = ssub.s32 1, %s3
  %s6 = scalar_select 0, %s5, %s3
  // Predicated region
  $region2: #{sparse_segmentation_net.4} parent=0 // pred_check
    _
  $region3: #{sparse_segmentation_net.4} parent=0 // pred_check_branch
    %8 = sbr.rel (0) target = $region5
  $region4: #{sparse_segmentation_net.4} parent=0 // pred_region
    _
  $region5: #{sparse_segmentation_net.4} parent=0 // pred_fallthru
    _
  // Predicated region
  $region6: #{sparse_segmentation_net.4} parent=0 // pred_check
    _
  $region7: #{sparse_segmentation_net.4} parent=0 // pred_check_branch
    %10 = sbr.rel (0) target = $region9
  $region8: #{sparse_segmentation_net.4} parent=0 // pred_region
    _
  $region9: #{sparse_segmentation_net.4} parent=0 // pred_fallthru
    _
  %v12 = vld [vmem:[%s0] sm:$0xff]
  %v13 = vld [vmem:[%s0 + $0x8] sm:$0xff]
  %v14 = vld [vmem:[%s0 + $0x10] sm:$0xff]
  %v15 = vld [vmem:[%s0 + $0x18] sm:$0xff]
  %v16 = vld [vmem:[%s0 + $0x20] sm:$0xff]
  %v17 = vld [vmem:[%s0 + $0x28] sm:$0xff]
  %v18 = vld [vmem:[%s0 + $0x30] sm:$0xff]
  %v19 = vld [vmem:[%s0 + $0x38] sm:$0xff]
  %v20 = vld [vmem:[%s0 + $0x40] sm:$0xff]
  %v21 = vld [vmem:[%s0 + $0x48] sm:$0xff]
  %v22 = vld [vmem:[%s0 + $0x50] sm:$0xff]
  %v23 = vld [vmem:[%s0 + $0x58] sm:$0xff]
  %v24 = vld [vmem:[%s0 + $0x60] sm:$0xff]
  %v25 = vld [vmem:[%s0 + $0x68] sm:$0xff]
  %v26 = vld [vmem:[%s0 + $0x70] sm:$0xff]
  %v27 = vld [vmem:[%s0 + $0x78] sm:$0xff]
  %v28 = vld [vmem:[%s0 + $0x80] sm:$0xff]
  %v29 = vld [vmem:[%s0 + $0x88] sm:$0xff]
  %v30 = vld [vmem:[%s0 + $0x90] sm:$0xff]
  %v31 = vld [vmem:[%s0 + $0x98] sm:$0xff]
  %v32 = vld [vmem:[%s0 + $0xa0] sm:$0xff]
  %v33 = vld [vmem:[%s0 + $0xa8] sm:$0xff]
  %v34 = vld [vmem:[%s0 + $0xb0] sm:$0xff]
  %v35 = vld [vmem:[%s0 + $0xb8] sm:$0xff]
  %v36 = vld [vmem:[%s0 + $0xc0] sm:$0xff]
  %v37 = vld [vmem:[%s0 + $0xc8] sm:$0xff]
  %v38 = vld [vmem:[%s0 + $0xd0] sm:$0xff]
  %v39 = vld [vmem:[%s0 + $0xd8] sm:$0xff]
  %v40 = vld [vmem:[%s0 + $0xe0] sm:$0xff]
  %v41 = vld [vmem:[%s0 + $0xe8] sm:$0xff]
  %v42 = vld [vmem:[%s0 + $0xf0] sm:$0xff]
  %v43 = vld [vmem:[%s0 + $0xf8] sm:$0xff]
  %v44 = vld [vmem:[%s1] sm:$0xf]
  %v45 = vld [vmem:[%s1 + $0x4] sm:$0xf]
  %v46 = vld [vmem:[%s1 + $0x8] sm:$0xf]
  %v47 = vld [vmem:[%s1 + $0xc] sm:$0xf]
  %v48 = vld [vmem:[%s1 + $0x10] sm:$0xf]
  %v49 = vld [vmem:[%s1 + $0x14] sm:$0xf]
  %v50 = vld [vmem:[%s1 + $0x18] sm:$0xf]
  %v51 = vld [vmem:[%s1 + $0x1c] sm:$0xf]
  %v52 = vld [vmem:[%s1 + $0x20] sm:$0xf]
  %v53 = vld [vmem:[%s1 + $0x24] sm:$0xf]
  %v54 = vld [vmem:[%s1 + $0x28] sm:$0xf]
  %v55 = vld [vmem:[%s1 + $0x2c] sm:$0xf]
  %v56 = vld [vmem:[%s1 + $0x30] sm:$0xf]
  %v57 = vld [vmem:[%s1 + $0x34] sm:$0xf]
  %v58 = vld [vmem:[%s1 + $0x38] sm:$0xf]
  %v59 = vld [vmem:[%s1 + $0x3c] sm:$0xf]
  %v60 = vld [vmem:[%s1 + $0x40] sm:$0xf]
  %v61 = vld [vmem:[%s1 + $0x44] sm:$0xf]
  %v62 = vld [vmem:[%s1 + $0x48] sm:$0xf]
  %v63 = vld [vmem:[%s1 + $0x4c] sm:$0xf]
  %v64 = vld [vmem:[%s1 + $0x50] sm:$0xf]
  %v65 = vld [vmem:[%s1 + $0x54] sm:$0xf]
  %v66 = vld [vmem:[%s1 + $0x58] sm:$0xf]
  %v67 = vld [vmem:[%s1 + $0x5c] sm:$0xf]
  %v68 = vld [vmem:[%s1 + $0x60] sm:$0xf]
  %v69 = vld [vmem:[%s1 + $0x64] sm:$0xf]
  %v70 = vld [vmem:[%s1 + $0x68] sm:$0xf]
  %v71 = vld [vmem:[%s1 + $0x6c] sm:$0xf]
  %v72 = vld [vmem:[%s1 + $0x70] sm:$0xf]
  %v73 = vld [vmem:[%s1 + $0x74] sm:$0xf]
  %v74 = vld [vmem:[%s1 + $0x78] sm:$0xf]
  %v75 = vld [vmem:[%s1 + $0x7c] sm:$0xf]
  %v76 = vld [vmem:[%s1 + $0x80] sm:$0xf]
  %v77 = vld [vmem:[%s1 + $0x84] sm:$0xf]
  %v78 = vld [vmem:[%s1 + $0x88] sm:$0xf]
  %v79 = vld [vmem:[%s1 + $0x8c] sm:$0xf]
  %v80 = vld [vmem:[%s1 + $0x90] sm:$0xf]
  %v81 = vld [vmem:[%s1 + $0x94] sm:$0xf]
  %v82 = vld [vmem:[%s1 + $0x98] sm:$0xf]
  %v83 = vld [vmem:[%s1 + $0x9c] sm:$0xf]
  %v84 = vld [vmem:[%s1 + $0xa0] sm:$0xf]
  %v85 = vld [vmem:[%s1 + $0xa4] sm:$0xf]
  %v86 = vld [vmem:[%s1 + $0xa8] sm:$0xf]
  %v87 = vld [vmem:[%s1 + $0xac] sm:$0xf]
  %v88 = vld [vmem:[%s1 + $0xb0] sm:$0xf]
  %v89 = vld [vmem:[%s1 + $0xb4] sm:$0xf]
  %v90 = vld [vmem:[%s1 + $0xb8] sm:$0xf]
  %v91 = vld [vmem:[%s1 + $0xbc] sm:$0xf]
  %v92 = vld [vmem:[%s1 + $0xc0] sm:$0xf]
  %v93 = vld [vmem:[%s1 + $0xc4] sm:$0xf]
  %v94 = vld [vmem:[%s1 + $0xc8] sm:$0xf]
  %v95 = vld [vmem:[%s1 + $0xcc] sm:$0xf]
  %v96 = vld [vmem:[%s1 + $0xd0] sm:$0xf]
  %v97 = vld [vmem:[%s1 + $0xd4] sm:$0xf]
  %v130 = vunpack.c.l.b16 %v12
  %v131 = vunpack.c.h.b16 %v12
  %v132 = vunpack.c.l.b16 %v13
  %v133 = vunpack.c.h.b16 %v13
  %v134 = vunpack.c.l.b16 %v14
  %v135 = vunpack.c.h.b16 %v14
  %v136 = vunpack.c.l.b16 %v15
  %v137 = vunpack.c.h.b16 %v15
  %v138 = vunpack.c.l.b16 %v16
  %v139 = vunpack.c.h.b16 %v16
  %v140 = vunpack.c.l.b16 %v17
  %v141 = vunpack.c.h.b16 %v17
  %v142 = vunpack.c.l.b16 %v18
  %v143 = vunpack.c.h.b16 %v18
  %v144 = vunpack.c.l.b16 %v19
  %v145 = vunpack.c.h.b16 %v19
  %v146 = vunpack.c.l.b16 %v20
  %v147 = vunpack.c.h.b16 %v20
  %v148 = vunpack.c.l.b16 %v21
  %v149 = vunpack.c.h.b16 %v21
  %v150 = vunpack.c.l.b16 %v22
  %v151 = vunpack.c.h.b16 %v22
  %v152 = vunpack.c.l.b16 %v23
  %v153 = vunpack.c.h.b16 %v23
  %v154 = vunpack.c.l.b16 %v24
  %v155 = vunpack.c.h.b16 %v24
  %v156 = vunpack.c.l.b16 %v25
  %v157 = vunpack.c.h.b16 %v25
  %v158 = vunpack.c.l.b16 %v26
  %v159 = vunpack.c.h.b16 %v26
  %v160 = vunpack.c.l.b16 %v27
  %v161 = vunpack.c.h.b16 %v27
  %v162 = vunpack.c.l.b16 %v28
  %v163 = vunpack.c.h.b16 %v28
  %v164 = vunpack.c.l.b16 %v29
  %v165 = vunpack.c.h.b16 %v29
  %v166 = vunpack.c.l.b16 %v30
  %v167 = vunpack.c.h.b16 %v30
  %v168 = vunpack.c.l.b16 %v31
  %v169 = vunpack.c.h.b16 %v31
  %v170 = vunpack.c.l.b16 %v32
  %v171 = vunpack.c.h.b16 %v32
  %v172 = vunpack.c.l.b16 %v33
  %v173 = vunpack.c.h.b16 %v33
  %v174 = vunpack.c.l.b16 %v34
  %v175 = vunpack.c.h.b16 %v34
  %v176 = vunpack.c.l.b16 %v35
  %v177 = vunpack.c.h.b16 %v35
  %v178 = vunpack.c.l.b16 %v36
  %v179 = vunpack.c.h.b16 %v36
  %v180 = vunpack.c.l.b16 %v37
  %v181 = vunpack.c.h.b16 %v37
  %v182 = vunpack.c.l.b16 %v38
  %v183 = vunpack.c.h.b16 %v38
  %v184 = vunpack.c.l.b16 %v39
  %v185 = vunpack.c.h.b16 %v39
  %v186 = vunpack.c.l.b16 %v40
  %v187 = vunpack.c.h.b16 %v40
  %v188 = vunpack.c.l.b16 %v41
  %v189 = vunpack.c.h.b16 %v41
  %v190 = vunpack.c.l.b16 %v42
  %v191 = vunpack.c.h.b16 %v42
  %v192 = vunpack.c.l.b16 %v43
  %v193 = vunpack.c.h.b16 %v43
  %v194 = vpack.c.b16 %v134, %v130
  %v195 = vpack.c.b16 %v135, %v131
  %v196 = vpack.c.b16 %v136, %v132
  %v197 = vpack.c.b16 %v137, %v133
  %v198 = vpack.c.b16 %v142, %v138
  %v199 = vpack.c.b16 %v143, %v139
  %v200 = vpack.c.b16 %v144, %v140
  %v201 = vpack.c.b16 %v145, %v141
  %v202 = vpack.c.b16 %v150, %v146
  %v203 = vpack.c.b16 %v151, %v147
  %v204 = vpack.c.b16 %v152, %v148
  %v205 = vpack.c.b16 %v153, %v149
  %v206 = vpack.c.b16 %v158, %v154
  %v207 = vpack.c.b16 %v159, %v155
  %v208 = vpack.c.b16 %v160, %v156
  %v209 = vpack.c.b16 %v161, %v157
  %v210 = vpack.c.b16 %v166, %v162
  %v211 = vpack.c.b16 %v167, %v163
  %v212 = vpack.c.b16 %v168, %v164
  %v213 = vpack.c.b16 %v169, %v165
  %v214 = vpack.c.b16 %v174, %v170
  %v215 = vpack.c.b16 %v175, %v171
  %v216 = vpack.c.b16 %v176, %v172
  %v217 = vpack.c.b16 %v177, %v173
  %v218 = vpack.c.b16 %v182, %v178
  %v219 = vpack.c.b16 %v183, %v179
  %v220 = vpack.c.b16 %v184, %v180
  %v221 = vpack.c.b16 %v185, %v181
  %v222 = vpack.c.b16 %v190, %v186
  %v223 = vpack.c.b16 %v191, %v187
  %v224 = vpack.c.b16 %v192, %v188
  %v225 = vpack.c.b16 %v193, %v189
  %v304 = vunpack.c.l.b16 %v44
  %v305 = vunpack.c.l.b16 %v45
  %v306 = vunpack.c.l.b16 %v46
  %v307 = vunpack.c.l.b16 %v47
  %v308 = vunpack.c.l.b16 %v48
  %v309 = vunpack.c.l.b16 %v49
  %v310 = vunpack.c.l.b16 %v50
  %v311 = vunpack.c.l.b16 %v51
  %v312 = vunpack.c.l.b16 %v52
  %v313 = vunpack.c.l.b16 %v53
  %v314 = vunpack.c.l.b16 %v54
  %v315 = vunpack.c.l.b16 %v55
  %v316 = vunpack.c.l.b16 %v56
  %v317 = vunpack.c.l.b16 %v57
  %v318 = vunpack.c.l.b16 %v58
  %v319 = vunpack.c.l.b16 %v59
  %v320 = vunpack.c.l.b16 %v60
  %v321 = vunpack.c.l.b16 %v61
  %v322 = vunpack.c.l.b16 %v62
  %v323 = vunpack.c.l.b16 %v63
  %v324 = vunpack.c.l.b16 %v64
  %v325 = vunpack.c.l.b16 %v65
  %v326 = vunpack.c.l.b16 %v66
  %v327 = vunpack.c.l.b16 %v67
  %v328 = vunpack.c.l.b16 %v68
  %v329 = vunpack.c.l.b16 %v69
  %v330 = vunpack.c.l.b16 %v70
  %v331 = vunpack.c.l.b16 %v71
  %v332 = vunpack.c.l.b16 %v72
  %v333 = vunpack.c.l.b16 %v73
  %v334 = vunpack.c.l.b16 %v74
  %v335 = vunpack.c.l.b16 %v75
  %v336 = vunpack.c.l.b16 %v76
  %v337 = vunpack.c.l.b16 %v77
  %v338 = vunpack.c.l.b16 %v78
  %v339 = vunpack.c.l.b16 %v79
  %v340 = vunpack.c.l.b16 %v80
  %v341 = vunpack.c.l.b16 %v81
  %v342 = vunpack.c.l.b16 %v82
  %v343 = vunpack.c.l.b16 %v83
  %v344 = vunpack.c.l.b16 %v84
  %v345 = vunpack.c.l.b16 %v85
  %v346 = vunpack.c.l.b16 %v86
  %v347 = vunpack.c.l.b16 %v87
  %v348 = vunpack.c.l.b16 %v88
  %v349 = vunpack.c.l.b16 %v89
  %v350 = vunpack.c.l.b16 %v90
  %v351 = vunpack.c.l.b16 %v91
  %v352 = vunpack.c.l.b16 %v92
  %v353 = vunpack.c.l.b16 %v93
  %v354 = vunpack.c.l.b16 %v94
  %v355 = vunpack.c.l.b16 %v95
  %v356 = vunpack.c.l.b16 %v96
  %v357 = vunpack.c.l.b16 %v97
  %v358 = vpack.c.b16 %v305, %v304
  %v359 = vpack.c.b16 %v307, %v306
  %v360 = vpack.c.b16 %v309, %v308
  %v361 = vpack.c.b16 %v311, %v310
  %v362 = vpack.c.b16 %v313, %v312
  %v363 = vpack.c.b16 %v315, %v314
  %v364 = vpack.c.b16 %v317, %v316
  %v365 = vpack.c.b16 %v319, %v318
  %v366 = vpack.c.b16 %v321, %v320
  %v367 = vpack.c.b16 %v323, %v322
  %v368 = vpack.c.b16 %v325, %v324
  %v369 = vpack.c.b16 %v327, %v326
  %v370 = vpack.c.b16 %v329, %v328
  %v371 = vpack.c.b16 %v331, %v330
  %v372 = vpack.c.b16 %v333, %v332
  %v373 = vpack.c.b16 %v335, %v334
  %v374 = vpack.c.b16 %v337, %v336
  %v375 = vpack.c.b16 %v339, %v338
  %v376 = vpack.c.b16 %v341, %v340
  %v377 = vpack.c.b16 %v343, %v342
  %v378 = vpack.c.b16 %v345, %v344
  %v379 = vpack.c.b16 %v347, %v346
  %v380 = vpack.c.b16 %v349, %v348
  %v381 = vpack.c.b16 %v351, %v350
  %v382 = vpack.c.b16 %v353, %v352
  %v383 = vpack.c.b16 %v355, %v354
  %v384 = vpack.c.b16 %v357, %v356
  %vm412 = vcmask 392192
  %v414 = vsel %vm412, %v197, 0
  %v417 = vsel %vm412, %v201, 0
  %v420 = vsel %vm412, %v205, 0
  %v423 = vsel %vm412, %v209, 0
  %v426 = vsel %vm412, %v213, 0
  %v429 = vsel %vm412, %v217, 0
  %v432 = vsel %vm412, %v221, 0
  %v435 = vsel %vm412, %v225, 0
  %437 = vmatprep.subr.bf16.mxu0 0
  %438 = vmatpush1.bf16.msra.mxu0 %v365
  %439 = vmatprep.subr.bf16.mxu0 0
  %440 = vmatpush1.bf16.msra.mxu0 %v364
  %441 = vmatprep.subr.bf16.mxu0 0
  %442 = vmatpush1.bf16.msra.mxu0 %v363
  %443 = vmatprep.subr.bf16.mxu0 0
  %444 = vmatpush1.bf16.msra.mxu0 %v362
  %445 = vmatprep.subr.bf16.mxu0 0
  %446 = vmatpush1.bf16.msra.mxu0 %v361
  %447 = vmatprep.subr.bf16.mxu0 0
  %448 = vmatpush1.bf16.msra.mxu0 %v360
  %449 = vmatprep.subr.bf16.mxu0 0
  %450 = vmatpush1.bf16.msra.mxu0 %v359
  %451 = vmatprep.subr.bf16.mxu0 0
  %452 = vmatpush1.bf16.msra.mxu0 %v358
  %453 = vmatprep.subr.bf16.mxu0 0
  %454 = vmatpush2.bf16.msra.mxu0 %v373
  %455 = vmatprep.subr.bf16.mxu0 0
  %456 = vmatpush2.bf16.msra.mxu0 %v372
  %457 = vmatprep.subr.bf16.mxu0 0
  %458 = vmatpush2.bf16.msra.mxu0 %v371
  %459 = vmatprep.subr.bf16.mxu0 0
  %460 = vmatpush2.bf16.msra.mxu0 %v370
  %461 = vmatprep.subr.bf16.mxu0 0
  %462 = vmatpush2.bf16.msra.mxu0 %v369
  %463 = vmatprep.subr.bf16.mxu0 0
  %464 = vmatpush2.bf16.msra.mxu0 %v368
  %465 = vmatprep.subr.bf16.mxu0 0
  %466 = vmatpush2.bf16.msra.mxu0 %v367
  %467 = vmatprep.subr.bf16.mxu0 0
  %468 = vmatpush2.bf16.msra.mxu0 %v366
  %469 = vmatprep.mubr.bf16.mxu0 %v195
  %470 = vmatmul.mubr.bf16.gmra.mxu0 %v194
  %v471 = vpop.f32.mrf.mxu0
  %v472 = vadd.f32 0.0, %v471
  %v473 = vpop.f32.mrf.mxu0
  %v474 = vpop.f32.mrf.mxu0
  %v475 = vadd.f32 0.0, %v474
  %v476 = vpop.f32.mrf.mxu0
  %477 = vmatprep.mubr.bf16.mxu0 %v199
  %478 = vmatmul.mubr.bf16.gmra.mxu0 %v198
  %v479 = vpop.f32.mrf.mxu0
  %v480 = vadd.f32 0.0, %v479
  %v481 = vpop.f32.mrf.mxu0
  %v482 = vpop.f32.mrf.mxu0
  %v483 = vadd.f32 0.0, %v482
  %v484 = vpop.f32.mrf.mxu0
  %485 = vmatprep.mubr.bf16.mxu0 %v203
  %486 = vmatmul.mubr.bf16.gmra.mxu0 %v202
  %v487 = vpop.f32.mrf.mxu0
  %v488 = vadd.f32 0.0, %v487
  %v489 = vpop.f32.mrf.mxu0
  %v490 = vpop.f32.mrf.mxu0
  %v491 = vadd.f32 0.0, %v490
  %v492 = vpop.f32.mrf.mxu0
  %493 = vmatprep.mubr.bf16.mxu0 %v207
  %494 = vmatmul.mubr.bf16.gmra.mxu0 %v206
  %v495 = vpop.f32.mrf.mxu0
  %v496 = vadd.f32 0.0, %v495
  %v497 = vpop.f32.mrf.mxu0
  %v498 = vpop.f32.mrf.mxu0
  %v499 = vadd.f32 0.0, %v498
  %v500 = vpop.f32.mrf.mxu0
  %501 = vmatprep.mubr.bf16.mxu0 %v211
  %502 = vmatmul.mubr.bf16.gmra.mxu0 %v210
  %v503 = vpop.f32.mrf.mxu0
  %v504 = vadd.f32 0.0, %v503
  %v505 = vpop.f32.mrf.mxu0
  %v506 = vpop.f32.mrf.mxu0
  %v507 = vadd.f32 0.0, %v506
  %v508 = vpop.f32.mrf.mxu0
  %509 = vmatprep.mubr.bf16.mxu0 %v215
  %510 = vmatmul.mubr.bf16.gmra.mxu0 %v214
  %v511 = vpop.f32.mrf.mxu0
  %v512 = vadd.f32 0.0, %v511
  %v513 = vpop.f32.mrf.mxu0
  %v514 = vpop.f32.mrf.mxu0
  %v515 = vadd.f32 0.0, %v514
  %v516 = vpop.f32.mrf.mxu0
  %517 = vmatprep.mubr.bf16.mxu0 %v219
  %518 = vmatmul.mubr.bf16.gmra.mxu0 %v218
  %v519 = vpop.f32.mrf.mxu0
  %v520 = vadd.f32 0.0, %v519
  %v521 = vpop.f32.mrf.mxu0
  %v522 = vpop.f32.mrf.mxu0
  %v523 = vadd.f32 0.0, %v522
  %v524 = vpop.f32.mrf.mxu0
  %525 = vmatprep.mubr.bf16.mxu0 %v223
  %526 = vmatmul.mubr.bf16.gmra.mxu0 %v222
  %v527 = vpop.f32.mrf.mxu0
  %v528 = vadd.f32 0.0, %v527
  %v529 = vpop.f32.mrf.mxu0
  %v530 = vpop.f32.mrf.mxu0
  %v531 = vadd.f32 0.0, %v530
  %v532 = vpop.f32.mrf.mxu0
  %533 = vdwg.mxu0
  %534 = vmatprep.subr.bf16.mxu0 0
  %535 = vmatpush1.bf16.msra.mxu0 %v381
  %536 = vmatprep.subr.bf16.mxu0 0
  %537 = vmatpush1.bf16.msra.mxu0 %v380
  %538 = vmatprep.subr.bf16.mxu0 0
  %539 = vmatpush1.bf16.msra.mxu0 %v379
  %540 = vmatprep.subr.bf16.mxu0 0
  %541 = vmatpush1.bf16.msra.mxu0 %v378
  %542 = vmatprep.subr.bf16.mxu0 0
  %543 = vmatpush1.bf16.msra.mxu0 %v377
  %544 = vmatprep.subr.bf16.mxu0 0
  %545 = vmatpush1.bf16.msra.mxu0 %v376
  %546 = vmatprep.subr.bf16.mxu0 0
  %547 = vmatpush1.bf16.msra.mxu0 %v375
  %548 = vmatprep.subr.bf16.mxu0 0
  %549 = vmatpush1.bf16.msra.mxu0 %v374
  %550 = vmatprep.subr.bf16.mxu0 0
  %551 = vmatpush2.bf16.msra.mxu0 0
  %552 = vmatprep.subr.bf16.mxu0 0
  %553 = vmatpush2.bf16.msra.mxu0 0
  %554 = vmatprep.subr.bf16.mxu0 0
  %555 = vmatpush2.bf16.msra.mxu0 0
  %556 = vmatprep.subr.bf16.mxu0 0
  %557 = vmatpush2.bf16.msra.mxu0 0
  %558 = vmatprep.subr.bf16.mxu0 0
  %559 = vmatpush2.bf16.msra.mxu0 0
  %560 = vmatprep.subr.bf16.mxu0 0
  %561 = vmatpush2.bf16.msra.mxu0 %v384
  %562 = vmatprep.subr.bf16.mxu0 0
  %563 = vmatpush2.bf16.msra.mxu0 %v383
  %564 = vmatprep.subr.bf16.mxu0 0
  %565 = vmatpush2.bf16.msra.mxu0 %v382
  %566 = vmatprep.mubr.bf16.mxu0 %v414
  %567 = vmatmul.mubr.bf16.gmra.mxu0 %v196
  %v568 = vpop.f32.mrf.mxu0
  %v569 = vadd.f32 %v472, %v568
  %v570 = vpop.f32.mrf.mxu0
  %v571 = vpop.f32.mrf.mxu0
  %v572 = vadd.f32 %v475, %v571
  %v573 = vpop.f32.mrf.mxu0
  %574 = vmatprep.mubr.bf16.mxu0 %v417
  %575 = vmatmul.mubr.bf16.gmra.mxu0 %v200
  %v576 = vpop.f32.mrf.mxu0
  %v577 = vadd.f32 %v480, %v576
  %v578 = vpop.f32.mrf.mxu0
  %v579 = vpop.f32.mrf.mxu0
  %v580 = vadd.f32 %v483, %v579
  %v581 = vpop.f32.mrf.mxu0
  %582 = vmatprep.mubr.bf16.mxu0 %v420
  %583 = vmatmul.mubr.bf16.gmra.mxu0 %v204
  %v584 = vpop.f32.mrf.mxu0
  %v585 = vadd.f32 %v488, %v584
  %v586 = vpop.f32.mrf.mxu0
  %v587 = vpop.f32.mrf.mxu0
  %v588 = vadd.f32 %v491, %v587
  %v589 = vpop.f32.mrf.mxu0
  %590 = vmatprep.mubr.bf16.mxu0 %v423
  %591 = vmatmul.mubr.bf16.gmra.mxu0 %v208
  %v592 = vpop.f32.mrf.mxu0
  %v593 = vadd.f32 %v496, %v592
  %v594 = vpop.f32.mrf.mxu0
  %v595 = vpop.f32.mrf.mxu0
  %v596 = vadd.f32 %v499, %v595
  %v597 = vpop.f32.mrf.mxu0
  %598 = vmatprep.mubr.bf16.mxu0 %v426
  %599 = vmatmul.mubr.bf16.gmra.mxu0 %v212
  %v600 = vpop.f32.mrf.mxu0
  %v601 = vadd.f32 %v504, %v600
  %v602 = vpop.f32.mrf.mxu0
  %v603 = vpop.f32.mrf.mxu0
  %v604 = vadd.f32 %v507, %v603
  %v605 = vpop.f32.mrf.mxu0
  %606 = vmatprep.mubr.bf16.mxu0 %v429
  %607 = vmatmul.mubr.bf16.gmra.mxu0 %v216
  %v608 = vpop.f32.mrf.mxu0
  %v609 = vadd.f32 %v512, %v608
  %v610 = vpop.f32.mrf.mxu0
  %v611 = vpop.f32.mrf.mxu0
  %v612 = vadd.f32 %v515, %v611
  %v613 = vpop.f32.mrf.mxu0
  %614 = vmatprep.mubr.bf16.mxu0 %v432
  %615 = vmatmul.mubr.bf16.gmra.mxu0 %v220
  %v616 = vpop.f32.mrf.mxu0
  %v617 = vadd.f32 %v520, %v616
  %v618 = vpop.f32.mrf.mxu0
  %v619 = vpop.f32.mrf.mxu0
  %v620 = vadd.f32 %v523, %v619
  %v621 = vpop.f32.mrf.mxu0
  %622 = vmatprep.mubr.bf16.mxu0 %v435
  %623 = vmatmul.mubr.bf16.gmra.mxu0 %v224
  %v624 = vpop.f32.mrf.mxu0
  %v625 = vadd.f32 %v528, %v624
  %v626 = vpop.f32.mrf.mxu0
  %v627 = vpop.f32.mrf.mxu0
  %v628 = vadd.f32 %v531, %v627
  %v629 = vpop.f32.mrf.mxu0
  %630 = vdwg.mxu0
  %v631 = vpack.c.bf16 %v572, %v569
  %v632 = vpack.c.bf16 %v580, %v577
  %v633 = vpack.c.bf16 %v588, %v585
  %v634 = vpack.c.bf16 %v596, %v593
  %v635 = vpack.c.bf16 %v604, %v601
  %v636 = vpack.c.bf16 %v612, %v609
  %v637 = vpack.c.bf16 %v620, %v617
  %v638 = vpack.c.bf16 %v628, %v625
  %v647 = vunpack.c.l.b16 %v631
  %v648 = vunpack.c.h.b16 %v631
  %v649 = vunpack.c.l.b16 %v632
  %v650 = vunpack.c.h.b16 %v632
  %v651 = vunpack.c.l.b16 %v633
  %v652 = vunpack.c.h.b16 %v633
  %v653 = vunpack.c.l.b16 %v634
  %v654 = vunpack.c.h.b16 %v634
  %v655 = vunpack.c.l.b16 %v635
  %v656 = vunpack.c.h.b16 %v635
  %v657 = vunpack.c.l.b16 %v636
  %v658 = vunpack.c.h.b16 %v636
  %v659 = vunpack.c.l.b16 %v637
  %v660 = vunpack.c.h.b16 %v637
  %v661 = vunpack.c.l.b16 %v638
  %v662 = vunpack.c.h.b16 %v638
  %v663 = vpack.c.b16 %v647, %v647
  %v664 = vpack.c.b16 %v648, %v648
  %v665 = vpack.c.b16 %v649, %v649
  %v666 = vpack.c.b16 %v650, %v650
  %v667 = vpack.c.b16 %v651, %v651
  %v668 = vpack.c.b16 %v652, %v652
  %v669 = vpack.c.b16 %v653, %v653
  %v670 = vpack.c.b16 %v654, %v654
  %v671 = vpack.c.b16 %v655, %v655
  %v672 = vpack.c.b16 %v656, %v656
  %v673 = vpack.c.b16 %v657, %v657
  %v674 = vpack.c.b16 %v658, %v658
  %v675 = vpack.c.b16 %v659, %v659
  %v676 = vpack.c.b16 %v660, %v660
  %v677 = vpack.c.b16 %v661, %v661
  %v678 = vpack.c.b16 %v662, %v662
  %vm695 = vcmask 257024
  %696 = vst.msk [vmem:[%s2] sm:$0xf] %vm695, %v663
  %697 = vst.msk [vmem:[%s2 + $0x4] sm:$0xf] %vm695, %v664
  %698 = vst.msk [vmem:[%s2 + $0x8] sm:$0xf] %vm695, %v665
  %699 = vst.msk [vmem:[%s2 + $0xc] sm:$0xf] %vm695, %v666
  %700 = vst.msk [vmem:[%s2 + $0x10] sm:$0xf] %vm695, %v667
  %701 = vst.msk [vmem:[%s2 + $0x14] sm:$0xf] %vm695, %v668
  %702 = vst.msk [vmem:[%s2 + $0x18] sm:$0xf] %vm695, %v669
  %703 = vst.msk [vmem:[%s2 + $0x1c] sm:$0xf] %vm695, %v670
  %704 = vst.msk [vmem:[%s2 + $0x20] sm:$0xf] %vm695, %v671
  %705 = vst.msk [vmem:[%s2 + $0x24] sm:$0xf] %vm695, %v672
  %706 = vst.msk [vmem:[%s2 + $0x28] sm:$0xf] %vm695, %v673
  %707 = vst.msk [vmem:[%s2 + $0x2c] sm:$0xf] %vm695, %v674
  %708 = vst.msk [vmem:[%s2 + $0x30] sm:$0xf] %vm695, %v675
  %709 = vst.msk [vmem:[%s2 + $0x34] sm:$0xf] %vm695, %v676
  %710 = vst.msk [vmem:[%s2 + $0x38] sm:$0xf] %vm695, %v677
  %711 = vst.msk [vmem:[%s2 + $0x3c] sm:$0xf] %vm695, %v678
  // Predicated region
  $region10: #{sparse_segmentation_net.4} parent=0 // pred_check
    _
  $region11: #{sparse_segmentation_net.4} parent=0 // pred_check_branch
    %713 = sbr.rel (0) target = $region13
  $region12: #{sparse_segmentation_net.4} parent=0 // pred_region
    _
  $region13: #{sparse_segmentation_net.4} parent=0 // pred_fallthru
    _
  // Predicated region
  $region14: #{sparse_segmentation_net.4} parent=0 // pred_check
    _
  $region15: #{sparse_segmentation_net.4} parent=0 // pred_check_branch
    %715 = sbr.rel (0) target = $region17
  $region16: #{sparse_segmentation_net.4} parent=0 // pred_region
    _
  $region17: #{sparse_segmentation_net.4} parent=0 // pred_fallthru
    _

// kernel: sparse_segmentation_net.5
$region0: #{sparse_segmentation_net.5}
  #allocation0 [shape = 'u32[]', space=smem, size = 0x4, offset = 0x4, fixed_abs, tag = 'smem constant byte address 0x4 - core index']
  #allocation1 [shape = 'u32[144,128]{1,0:T(1,128)}', space=vmem, size = 0x12000, scoped, tag = 'internal scratch']
  %s0 = inlined_call_operand.vmem [shape: bf16[128,864], index: 0, kind: input, shape index: {}]
  %s1 = inlined_call_operand.vmem [shape: bf16[864,64], index: 1, kind: input, shape index: {}]
  %s2 = inlined_call_operand.vmem [shape: bf16[64,128], index: 2, kind: input, shape index: {}]
  %s3 = inlined_call_operand.vmem [shape: f32[1,128], index: 3, kind: input, shape index: {}]
  %s4 = inlined_call_operand.vmem [shape: bf16[128,128], index: 4, kind: output, shape index: {}]
  %s5 = sld [smem:[#allocation0]]
  $region26: #{sparse_segmentation_net.5} parent=0
    _
  %s7 = ssub.s32 1, %s5
  %s8 = scalar_select 0, %s7, %s5
  // Predicated region
  $region2: #{sparse_segmentation_net.5} parent=0 // pred_check
    _
  $region3: #{sparse_segmentation_net.5} parent=0 // pred_check_branch
    %10 = sbr.rel (0) target = $region5
  $region4: #{sparse_segmentation_net.5} parent=0 // pred_region
    _
  $region5: #{sparse_segmentation_net.5} parent=0 // pred_fallthru
    _
  // Predicated region
  $region6: #{sparse_segmentation_net.5} parent=0 // pred_check
    _
  $region7: #{sparse_segmentation_net.5} parent=0 // pred_check_branch
    %12 = sbr.rel (0) target = $region9
  $region8: #{sparse_segmentation_net.5} parent=0 // pred_region
    _
  $region9: #{sparse_segmentation_net.5} parent=0 // pred_fallthru
    _
  // Predicated region
  $region10: #{sparse_segmentation_net.5} parent=0 // pred_check
    _
  $region11: #{sparse_segmentation_net.5} parent=0 // pred_check_branch
    %14 = sbr.rel (0) target = $region13
  $region12: #{sparse_segmentation_net.5} parent=0 // pred_region
    _
  $region13: #{sparse_segmentation_net.5} parent=0 // pred_fallthru
    _
  // Predicated region
  $region14: #{sparse_segmentation_net.5} parent=0 // pred_check
    _
  $region15: #{sparse_segmentation_net.5} parent=0 // pred_check_branch
    %16 = sbr.rel (0) target = $region17
  $region16: #{sparse_segmentation_net.5} parent=0 // pred_region
    _
  $region17: #{sparse_segmentation_net.5} parent=0 // pred_fallthru
    _
  %v18 = vld [vmem:[%s0] sm:$0xff]
  %v19 = vld [vmem:[%s0 + $0x8] sm:$0xff]
  %v20 = vld [vmem:[%s0 + $0x10] sm:$0xff]
  %v21 = vld [vmem:[%s0 + $0x18] sm:$0xf]
  %v22 = vld [vmem:[%s0 + $0x1c] sm:$0xff]
  %v23 = vld [vmem:[%s0 + $0x24] sm:$0xff]
  %v24 = vld [vmem:[%s0 + $0x2c] sm:$0xff]
  %v25 = vld [vmem:[%s0 + $0x34] sm:$0xf]
  %v26 = vld [vmem:[%s0 + $0x38] sm:$0xff]
  %v27 = vld [vmem:[%s0 + $0x40] sm:$0xff]
  %v28 = vld [vmem:[%s0 + $0x48] sm:$0xff]
  %v29 = vld [vmem:[%s0 + $0x50] sm:$0xf]
  %v30 = vld [vmem:[%s0 + $0x54] sm:$0xff]
  %v31 = vld [vmem:[%s0 + $0x5c] sm:$0xff]
  %v32 = vld [vmem:[%s0 + $0x64] sm:$0xff]
  %v33 = vld [vmem:[%s0 + $0x6c] sm:$0xf]
  %v34 = vld [vmem:[%s0 + $0x70] sm:$0xff]
  %v35 = vld [vmem:[%s0 + $0x78] sm:$0xff]
  %v36 = vld [vmem:[%s0 + $0x80] sm:$0xff]
  %v37 = vld [vmem:[%s0 + $0x88] sm:$0xf]
  %v38 = vld [vmem:[%s0 + $0x8c] sm:$0xff]
  %v39 = vld [vmem:[%s0 + $0x94] sm:$0xff]
  %v40 = vld [vmem:[%s0 + $0x9c] sm:$0xff]
  %v41 = vld [vmem:[%s0 + $0xa4] sm:$0xf]
  %v42 = vld [vmem:[%s0 + $0xa8] sm:$0xff]
  %v43 = vld [vmem:[%s0 + $0xb0] sm:$0xff]
  %v44 = vld [vmem:[%s0 + $0xb8] sm:$0xff]
  %v45 = vld [vmem:[%s0 + $0xc0] sm:$0xf]
  %v46 = vld [vmem:[%s0 + $0xc4] sm:$0xff]
  %v47 = vld [vmem:[%s0 + $0xcc] sm:$0xff]
  %v48 = vld [vmem:[%s0 + $0xd4] sm:$0xff]
  %v49 = vld [vmem:[%s0 + $0xdc] sm:$0xf]
  %v50 = vld [vmem:[%s0 + $0xe0] sm:$0xff]
  %v51 = vld [vmem:[%s0 + $0xe8] sm:$0xff]
  %v52 = vld [vmem:[%s0 + $0xf0] sm:$0xff]
  %v53 = vld [vmem:[%s0 + $0xf8] sm:$0xf]
  %v54 = vld [vmem:[%s0 + $0xfc] sm:$0xff]
  %v55 = vld [vmem:[%s0 + $0x104] sm:$0xff]
  %v56 = vld [vmem:[%s0 + $0x10c] sm:$0xff]
  %v57 = vld [vmem:[%s0 + $0x114] sm:$0xf]
  %v58 = vld [vmem:[%s0 + $0x118] sm:$0xff]
  %v59 = vld [vmem:[%s0 + $0x120] sm:$0xff]
  %v60 = vld [vmem:[%s0 + $0x128] sm:$0xff]
  %v61 = vld [vmem:[%s0 + $0x130] sm:$0xf]
  %v62 = vld [vmem:[%s0 + $0x134] sm:$0xff]
  %v63 = vld [vmem:[%s0 + $0x13c] sm:$0xff]
  %v64 = vld [vmem:[%s0 + $0x144] sm:$0xff]
  %v65 = vld [vmem:[%s0 + $0x14c] sm:$0xf]
  %v66 = vld [vmem:[%s0 + $0x150] sm:$0xff]
  %v67 = vld [vmem:[%s0 + $0x158] sm:$0xff]
  %v68 = vld [vmem:[%s0 + $0x160] sm:$0xff]
  %v69 = vld [vmem:[%s0 + $0x168] sm:$0xf]
  %v70 = vld [vmem:[%s0 + $0x16c] sm:$0xff]
  %v71 = vld [vmem:[%s0 + $0x174] sm:$0xff]
  %v72 = vld [vmem:[%s0 + $0x17c] sm:$0xff]
  %v73 = vld [vmem:[%s0 + $0x184] sm:$0xf]
  %v74 = vld [vmem:[%s0 + $0x188] sm:$0xff]
  %v75 = vld [vmem:[%s0 + $0x190] sm:$0xff]
  %v76 = vld [vmem:[%s0 + $0x198] sm:$0xff]
  %v77 = vld [vmem:[%s0 + $0x1a0] sm:$0xf]
  %v78 = vld [vmem:[%s0 + $0x1a4] sm:$0xff]
  %v79 = vld [vmem:[%s0 + $0x1ac] sm:$0xff]
  %v80 = vld [vmem:[%s0 + $0x1b4] sm:$0xff]
  %v81 = vld [vmem:[%s0 + $0x1bc] sm:$0xf]
  %v82 = vld [vmem:[%s1] sm:$0xf]
  %v83 = vld [vmem:[%s1 + $0x4] sm:$0xf]
  %v84 = vld [vmem:[%s1 + $0x8] sm:$0xf]
  %v85 = vld [vmem:[%s1 + $0xc] sm:$0xf]
  %v86 = vld [vmem:[%s1 + $0x10] sm:$0xf]
  %v87 = vld [vmem:[%s1 + $0x14] sm:$0xf]
  %v88 = vld [vmem:[%s1 + $0x18] sm:$0xf]
  %v89 = vld [vmem:[%s1 + $0x1c] sm:$0xf]
  %v90 = vld [vmem:[%s1 + $0x20] sm:$0xf]
  %v91 = vld [vmem:[%s1 + $0x24] sm:$0xf]
  %v92 = vld [vmem:[%s1 + $0x28] sm:$0xf]
  %v93 = vld [vmem:[%s1 + $0x2c] sm:$0xf]
  %v94 = vld [vmem:[%s1 + $0x30] sm:$0xf]
  %v95 = vld [vmem:[%s1 + $0x34] sm:$0xf]
  %v96 = vld [vmem:[%s1 + $0x38] sm:$0xf]
  %v97 = vld [vmem:[%s1 + $0x3c] sm:$0xf]
  %v98 = vld [vmem:[%s1 + $0x40] sm:$0xf]
  %v99 = vld [vmem:[%s1 + $0x44] sm:$0xf]
  %v100 = vld [vmem:[%s1 + $0x48] sm:$0xf]
  %v101 = vld [vmem:[%s1 + $0x4c] sm:$0xf]
  %v102 = vld [vmem:[%s1 + $0x50] sm:$0xf]
  %v103 = vld [vmem:[%s1 + $0x54] sm:$0xf]
  %v104 = vld [vmem:[%s1 + $0x58] sm:$0xf]
  %v105 = vld [vmem:[%s1 + $0x5c] sm:$0xf]
  %v106 = vld [vmem:[%s1 + $0x60] sm:$0xf]
  %v107 = vld [vmem:[%s1 + $0x64] sm:$0xf]
  %v108 = vld [vmem:[%s1 + $0x68] sm:$0xf]
  %v109 = vld [vmem:[%s1 + $0x6c] sm:$0xf]
  %v110 = vld [vmem:[%s1 + $0x70] sm:$0xf]
  %v111 = vld [vmem:[%s1 + $0x74] sm:$0xf]
  %v112 = vld [vmem:[%s1 + $0x78] sm:$0xf]
  %v113 = vld [vmem:[%s1 + $0x7c] sm:$0xf]
  %v114 = vld [vmem:[%s1 + $0x80] sm:$0xf]
  %v115 = vld [vmem:[%s1 + $0x84] sm:$0xf]
  %v116 = vld [vmem:[%s1 + $0x88] sm:$0xf]
  %v117 = vld [vmem:[%s1 + $0x8c] sm:$0xf]
  %v118 = vld [vmem:[%s1 + $0x90] sm:$0xf]
  %v119 = vld [vmem:[%s1 + $0x94] sm:$0xf]
  %v120 = vld [vmem:[%s1 + $0x98] sm:$0xf]
  %v121 = vld [vmem:[%s1 + $0x9c] sm:$0xf]
  %v122 = vld [vmem:[%s1 + $0xa0] sm:$0xf]
  %v123 = vld [vmem:[%s1 + $0xa4] sm:$0xf]
  %v124 = vld [vmem:[%s1 + $0xa8] sm:$0xf]
  %v125 = vld [vmem:[%s1 + $0xac] sm:$0xf]
  %v126 = vld [vmem:[%s1 + $0xb0] sm:$0xf]
  %v127 = vld [vmem:[%s1 + $0xb4] sm:$0xf]
  %v128 = vld [vmem:[%s1 + $0xb8] sm:$0xf]
  %v129 = vld [vmem:[%s1 + $0xbc] sm:$0xf]
  %v130 = vld [vmem:[%s1 + $0xc0] sm:$0xf]
  %v131 = vld [vmem:[%s1 + $0xc4] sm:$0xf]
  %v132 = vld [vmem:[%s1 + $0xc8] sm:$0xf]
  %v133 = vld [vmem:[%s1 + $0xcc] sm:$0xf]
  %v134 = vld [vmem:[%s1 + $0xd0] sm:$0xf]
  %v135 = vld [vmem:[%s1 + $0xd4] sm:$0xf]
  %v136 = vld [vmem:[%s1 + $0xd8] sm:$0xf]
  %v137 = vld [vmem:[%s1 + $0xdc] sm:$0xf]
  %v138 = vld [vmem:[%s1 + $0xe0] sm:$0xf]
  %v139 = vld [vmem:[%s1 + $0xe4] sm:$0xf]
  %v140 = vld [vmem:[%s1 + $0xe8] sm:$0xf]
  %v141 = vld [vmem:[%s1 + $0xec] sm:$0xf]
  %v142 = vld [vmem:[%s1 + $0xf0] sm:$0xf]
  %v143 = vld [vmem:[%s1 + $0xf4] sm:$0xf]
  %v144 = vld [vmem:[%s1 + $0xf8] sm:$0xf]
  %v145 = vld [vmem:[%s1 + $0xfc] sm:$0xf]
  %v146 = vld [vmem:[%s1 + $0x100] sm:$0xf]
  %v147 = vld [vmem:[%s1 + $0x104] sm:$0xf]
  %v148 = vld [vmem:[%s1 + $0x108] sm:$0xf]
  %v149 = vld [vmem:[%s1 + $0x10c] sm:$0xf]
  %v150 = vld [vmem:[%s1 + $0x110] sm:$0xf]
  %v151 = vld [vmem:[%s1 + $0x114] sm:$0xf]
  %v152 = vld [vmem:[%s1 + $0x118] sm:$0xf]
  %v153 = vld [vmem:[%s1 + $0x11c] sm:$0xf]
  %v154 = vld [vmem:[%s1 + $0x120] sm:$0xf]
  %v155 = vld [vmem:[%s1 + $0x124] sm:$0xf]
  %v156 = vld [vmem:[%s1 + $0x128] sm:$0xf]
  %v157 = vld [vmem:[%s1 + $0x12c] sm:$0xf]
  %v158 = vld [vmem:[%s1 + $0x130] sm:$0xf]
  %v159 = vld [vmem:[%s1 + $0x134] sm:$0xf]
  %v160 = vld [vmem:[%s1 + $0x138] sm:$0xf]
  %v161 = vld [vmem:[%s1 + $0x13c] sm:$0xf]
  %v162 = vld [vmem:[%s1 + $0x140] sm:$0xf]
  %v163 = vld [vmem:[%s1 + $0x144] sm:$0xf]
  %v164 = vld [vmem:[%s1 + $0x148] sm:$0xf]
  %v165 = vld [vmem:[%s1 + $0x14c] sm:$0xf]
  %v166 = vld [vmem:[%s1 + $0x150] sm:$0xf]
  %v167 = vld [vmem:[%s1 + $0x154] sm:$0xf]
  %v168 = vld [vmem:[%s1 + $0x158] sm:$0xf]
  %v169 = vld [vmem:[%s1 + $0x15c] sm:$0xf]
  %v170 = vld [vmem:[%s1 + $0x160] sm:$0xf]
  %v171 = vld [vmem:[%s1 + $0x164] sm:$0xf]
  %v172 = vld [vmem:[%s1 + $0x168] sm:$0xf]
  %v173 = vld [vmem:[%s1 + $0x16c] sm:$0xf]
  %v174 = vld [vmem:[%s1 + $0x170] sm:$0xf]
  %v175 = vld [vmem:[%s1 + $0x174] sm:$0xf]
  %v176 = vld [vmem:[%s1 + $0x178] sm:$0xf]
  %v177 = vld [vmem:[%s1 + $0x17c] sm:$0xf]
  %v178 = vld [vmem:[%s1 + $0x180] sm:$0xf]
  %v179 = vld [vmem:[%s1 + $0x184] sm:$0xf]
  %v180 = vld [vmem:[%s1 + $0x188] sm:$0xf]
  %v181 = vld [vmem:[%s1 + $0x18c] sm:$0xf]
  %v182 = vld [vmem:[%s1 + $0x190] sm:$0xf]
  %v183 = vld [vmem:[%s1 + $0x194] sm:$0xf]
  %v184 = vld [vmem:[%s1 + $0x198] sm:$0xf]
  %v185 = vld [vmem:[%s1 + $0x19c] sm:$0xf]
  %v186 = vld [vmem:[%s1 + $0x1a0] sm:$0xf]
  %v187 = vld [vmem:[%s1 + $0x1a4] sm:$0xf]
  %v188 = vld [vmem:[%s1 + $0x1a8] sm:$0xf]
  %v189 = vld [vmem:[%s1 + $0x1ac] sm:$0xf]
  %v254 = vunpack.c.l.b16 %v18
  %v255 = vunpack.c.h.b16 %v18
  %v256 = vunpack.c.l.b16 %v19
  %v257 = vunpack.c.h.b16 %v19
  %v258 = vunpack.c.l.b16 %v20
  %v259 = vunpack.c.h.b16 %v20
  %v260 = vunpack.c.l.b16 %v21
  %v261 = vunpack.c.l.b16 %v22
  %v262 = vunpack.c.h.b16 %v22
  %v263 = vunpack.c.l.b16 %v23
  %v264 = vunpack.c.h.b16 %v23
  %v265 = vunpack.c.l.b16 %v24
  %v266 = vunpack.c.h.b16 %v24
  %v267 = vunpack.c.l.b16 %v25
  %v268 = vunpack.c.l.b16 %v26
  %v269 = vunpack.c.h.b16 %v26
  %v270 = vunpack.c.l.b16 %v27
  %v271 = vunpack.c.h.b16 %v27
  %v272 = vunpack.c.l.b16 %v28
  %v273 = vunpack.c.h.b16 %v28
  %v274 = vunpack.c.l.b16 %v29
  %v275 = vunpack.c.l.b16 %v30
  %v276 = vunpack.c.h.b16 %v30
  %v277 = vunpack.c.l.b16 %v31
  %v278 = vunpack.c.h.b16 %v31
  %v279 = vunpack.c.l.b16 %v32
  %v280 = vunpack.c.h.b16 %v32
  %v281 = vunpack.c.l.b16 %v33
  %v282 = vunpack.c.l.b16 %v34
  %v283 = vunpack.c.h.b16 %v34
  %v284 = vunpack.c.l.b16 %v35
  %v285 = vunpack.c.h.b16 %v35
  %v286 = vunpack.c.l.b16 %v36
  %v287 = vunpack.c.h.b16 %v36
  %v288 = vunpack.c.l.b16 %v37
  %v289 = vunpack.c.l.b16 %v38
  %v290 = vunpack.c.h.b16 %v38
  %v291 = vunpack.c.l.b16 %v39
  %v292 = vunpack.c.h.b16 %v39
  %v293 = vunpack.c.l.b16 %v40
  %v294 = vunpack.c.h.b16 %v40
  %v295 = vunpack.c.l.b16 %v41
  %v296 = vunpack.c.l.b16 %v42
  %v297 = vunpack.c.h.b16 %v42
  %v298 = vunpack.c.l.b16 %v43
  %v299 = vunpack.c.h.b16 %v43
  %v300 = vunpack.c.l.b16 %v44
  %v301 = vunpack.c.h.b16 %v44
  %v302 = vunpack.c.l.b16 %v45
  %v303 = vunpack.c.l.b16 %v46
  %v304 = vunpack.c.h.b16 %v46
  %v305 = vunpack.c.l.b16 %v47
  %v306 = vunpack.c.h.b16 %v47
  %v307 = vunpack.c.l.b16 %v48
  %v308 = vunpack.c.h.b16 %v48
  %v309 = vunpack.c.l.b16 %v49
  %v310 = vunpack.c.l.b16 %v50
  %v311 = vunpack.c.h.b16 %v50
  %v312 = vunpack.c.l.b16 %v51
  %v313 = vunpack.c.h.b16 %v51
  %v314 = vunpack.c.l.b16 %v52
  %v315 = vunpack.c.h.b16 %v52
  %v316 = vunpack.c.l.b16 %v53
  %v317 = vunpack.c.l.b16 %v54
  %v318 = vunpack.c.h.b16 %v54
  %v319 = vunpack.c.l.b16 %v55
  %v320 = vunpack.c.h.b16 %v55
  %v321 = vunpack.c.l.b16 %v56
  %v322 = vunpack.c.h.b16 %v56
  %v323 = vunpack.c.l.b16 %v57
  %v324 = vunpack.c.l.b16 %v58
  %v325 = vunpack.c.h.b16 %v58
  %v326 = vunpack.c.l.b16 %v59
  %v327 = vunpack.c.h.b16 %v59
  %v328 = vunpack.c.l.b16 %v60
  %v329 = vunpack.c.h.b16 %v60
  %v330 = vunpack.c.l.b16 %v61
  %v331 = vunpack.c.l.b16 %v62
  %v332 = vunpack.c.h.b16 %v62
  %v333 = vunpack.c.l.b16 %v63
  %v334 = vunpack.c.h.b16 %v63
  %v335 = vunpack.c.l.b16 %v64
  %v336 = vunpack.c.h.b16 %v64
  %v337 = vunpack.c.l.b16 %v65
  %v338 = vunpack.c.l.b16 %v66
  %v339 = vunpack.c.h.b16 %v66
  %v340 = vunpack.c.l.b16 %v67
  %v341 = vunpack.c.h.b16 %v67
  %v342 = vunpack.c.l.b16 %v68
  %v343 = vunpack.c.h.b16 %v68
  %v344 = vunpack.c.l.b16 %v69
  %v345 = vunpack.c.l.b16 %v70
  %v346 = vunpack.c.h.b16 %v70
  %v347 = vunpack.c.l.b16 %v71
  %v348 = vunpack.c.h.b16 %v71
  %v349 = vunpack.c.l.b16 %v72
  %v350 = vunpack.c.h.b16 %v72
  %v351 = vunpack.c.l.b16 %v73
  %v352 = vunpack.c.l.b16 %v74
  %v353 = vunpack.c.h.b16 %v74
  %v354 = vunpack.c.l.b16 %v75
  %v355 = vunpack.c.h.b16 %v75
  %v356 = vunpack.c.l.b16 %v76
  %v357 = vunpack.c.h.b16 %v76
  %v358 = vunpack.c.l.b16 %v77
  %v359 = vunpack.c.l.b16 %v78
  %v360 = vunpack.c.h.b16 %v78
  %v361 = vunpack.c.l.b16 %v79
  %v362 = vunpack.c.h.b16 %v79
  %v363 = vunpack.c.l.b16 %v80
  %v364 = vunpack.c.h.b16 %v80
  %v365 = vunpack.c.l.b16 %v81
  %v366 = vpack.c.b16 %v261, %v254
  %v367 = vpack.c.b16 %v262, %v255
  %v368 = vpack.c.b16 %v263, %v256
  %v369 = vpack.c.b16 %v264, %v257
  %v370 = vpack.c.b16 %v265, %v258
  %v371 = vpack.c.b16 %v266, %v259
  %v372 = vpack.c.b16 %v267, %v260
  %v373 = vpack.c.b16 %v275, %v268
  %v374 = vpack.c.b16 %v276, %v269
  %v375 = vpack.c.b16 %v277, %v270
  %v376 = vpack.c.b16 %v278, %v271
  %v377 = vpack.c.b16 %v279, %v272
  %v378 = vpack.c.b16 %v280, %v273
  %v379 = vpack.c.b16 %v281, %v274
  %v380 = vpack.c.b16 %v289, %v282
  %v381 = vpack.c.b16 %v290, %v283
  %v382 = vpack.c.b16 %v291, %v284
  %v383 = vpack.c.b16 %v292, %v285
  %v384 = vpack.c.b16 %v293, %v286
  %v385 = vpack.c.b16 %v294, %v287
  %v386 = vpack.c.b16 %v295, %v288
  %v387 = vpack.c.b16 %v303, %v296
  %v388 = vpack.c.b16 %v304, %v297
  %v389 = vpack.c.b16 %v305, %v298
  %v390 = vpack.c.b16 %v306, %v299
  %v391 = vpack.c.b16 %v307, %v300
  %v392 = vpack.c.b16 %v308, %v301
  %v393 = vpack.c.b16 %v309, %v302
  %v394 = vpack.c.b16 %v317, %v310
  %v395 = vpack.c.b16 %v318, %v311
  %v396 = vpack.c.b16 %v319, %v312
  %v397 = vpack.c.b16 %v320, %v313
  %v398 = vpack.c.b16 %v321, %v314
  %v399 = vpack.c.b16 %v322, %v315
  %v400 = vpack.c.b16 %v323, %v316
  %v401 = vpack.c.b16 %v331, %v324
  %v402 = vpack.c.b16 %v332, %v325
  %v403 = vpack.c.b16 %v333, %v326
  %v404 = vpack.c.b16 %v334, %v327
  %v405 = vpack.c.b16 %v335, %v328
  %v406 = vpack.c.b16 %v336, %v329
  %v407 = vpack.c.b16 %v337, %v330
  %v408 = vpack.c.b16 %v345, %v338
  %v409 = vpack.c.b16 %v346, %v339
  %v410 = vpack.c.b16 %v347, %v340
  %v411 = vpack.c.b16 %v348, %v341
  %v412 = vpack.c.b16 %v349, %v342
  %v413 = vpack.c.b16 %v350, %v343
  %v414 = vpack.c.b16 %v351, %v344
  %v415 = vpack.c.b16 %v359, %v352
  %v416 = vpack.c.b16 %v360, %v353
  %v417 = vpack.c.b16 %v361, %v354
  %v418 = vpack.c.b16 %v362, %v355
  %v419 = vpack.c.b16 %v363, %v356
  %v420 = vpack.c.b16 %v364, %v357
  %v421 = vpack.c.b16 %v365, %v358
  %v578 = vunpack.c.l.b16 %v82
  %v579 = vunpack.c.l.b16 %v83
  %v580 = vunpack.c.l.b16 %v84
  %v581 = vunpack.c.l.b16 %v85
  %v582 = vunpack.c.l.b16 %v86
  %v583 = vunpack.c.l.b16 %v87
  %v584 = vunpack.c.l.b16 %v88
  %v585 = vunpack.c.l.b16 %v89
  %v586 = vunpack.c.l.b16 %v90
  %v587 = vunpack.c.l.b16 %v91
  %v588 = vunpack.c.l.b16 %v92
  %v589 = vunpack.c.l.b16 %v93
  %v590 = vunpack.c.l.b16 %v94
  %v591 = vunpack.c.l.b16 %v95
  %v592 = vunpack.c.l.b16 %v96
  %v593 = vunpack.c.l.b16 %v97
  %v594 = vunpack.c.l.b16 %v98
  %v595 = vunpack.c.l.b16 %v99
  %v596 = vunpack.c.l.b16 %v100
  %v597 = vunpack.c.l.b16 %v101
  %v598 = vunpack.c.l.b16 %v102
  %v599 = vunpack.c.l.b16 %v103
  %v600 = vunpack.c.l.b16 %v104
  %v601 = vunpack.c.l.b16 %v105
  %v602 = vunpack.c.l.b16 %v106
  %v603 = vunpack.c.l.b16 %v107
  %v604 = vunpack.c.l.b16 %v108
  %v605 = vunpack.c.l.b16 %v109
  %v606 = vunpack.c.l.b16 %v110
  %v607 = vunpack.c.l.b16 %v111
  %v608 = vunpack.c.l.b16 %v112
  %v609 = vunpack.c.l.b16 %v113
  %v610 = vunpack.c.l.b16 %v114
  %v611 = vunpack.c.l.b16 %v115
  %v612 = vunpack.c.l.b16 %v116
  %v613 = vunpack.c.l.b16 %v117
  %v614 = vunpack.c.l.b16 %v118
  %v615 = vunpack.c.l.b16 %v119
  %v616 = vunpack.c.l.b16 %v120
  %v617 = vunpack.c.l.b16 %v121
  %v618 = vunpack.c.l.b16 %v122
  %v619 = vunpack.c.l.b16 %v123
  %v620 = vunpack.c.l.b16 %v124
  %v621 = vunpack.c.l.b16 %v125
  %v622 = vunpack.c.l.b16 %v126
  %v623 = vunpack.c.l.b16 %v127
  %v624 = vunpack.c.l.b16 %v128
  %v625 = vunpack.c.l.b16 %v129
  %v626 = vunpack.c.l.b16 %v130
  %v627 = vunpack.c.l.b16 %v131
  %v628 = vunpack.c.l.b16 %v132
  %v629 = vunpack.c.l.b16 %v133
  %v630 = vunpack.c.l.b16 %v134
  %v631 = vunpack.c.l.b16 %v135
  %v632 = vunpack.c.l.b16 %v136
  %v633 = vunpack.c.l.b16 %v137
  %v634 = vunpack.c.l.b16 %v138
  %v635 = vunpack.c.l.b16 %v139
  %v636 = vunpack.c.l.b16 %v140
  %v637 = vunpack.c.l.b16 %v141
  %v638 = vunpack.c.l.b16 %v142
  %v639 = vunpack.c.l.b16 %v143
  %v640 = vunpack.c.l.b16 %v144
  %v641 = vunpack.c.l.b16 %v145
  %v642 = vunpack.c.l.b16 %v146
  %v643 = vunpack.c.l.b16 %v147
  %v644 = vunpack.c.l.b16 %v148
  %v645 = vunpack.c.l.b16 %v149
  %v646 = vunpack.c.l.b16 %v150
  %v647 = vunpack.c.l.b16 %v151
  %v648 = vunpack.c.l.b16 %v152
  %v649 = vunpack.c.l.b16 %v153
  %v650 = vunpack.c.l.b16 %v154
  %v651 = vunpack.c.l.b16 %v155
  %v652 = vunpack.c.l.b16 %v156
  %v653 = vunpack.c.l.b16 %v157
  %v654 = vunpack.c.l.b16 %v158
  %v655 = vunpack.c.l.b16 %v159
  %v656 = vunpack.c.l.b16 %v160
  %v657 = vunpack.c.l.b16 %v161
  %v658 = vunpack.c.l.b16 %v162
  %v659 = vunpack.c.l.b16 %v163
  %v660 = vunpack.c.l.b16 %v164
  %v661 = vunpack.c.l.b16 %v165
  %v662 = vunpack.c.l.b16 %v166
  %v663 = vunpack.c.l.b16 %v167
  %v664 = vunpack.c.l.b16 %v168
  %v665 = vunpack.c.l.b16 %v169
  %v666 = vunpack.c.l.b16 %v170
  %v667 = vunpack.c.l.b16 %v171
  %v668 = vunpack.c.l.b16 %v172
  %v669 = vunpack.c.l.b16 %v173
  %v670 = vunpack.c.l.b16 %v174
  %v671 = vunpack.c.l.b16 %v175
  %v672 = vunpack.c.l.b16 %v176
  %v673 = vunpack.c.l.b16 %v177
  %v674 = vunpack.c.l.b16 %v178
  %v675 = vunpack.c.l.b16 %v179
  %v676 = vunpack.c.l.b16 %v180
  %v677 = vunpack.c.l.b16 %v181
  %v678 = vunpack.c.l.b16 %v182
  %v679 = vunpack.c.l.b16 %v183
  %v680 = vunpack.c.l.b16 %v184
  %v681 = vunpack.c.l.b16 %v185
  %v682 = vunpack.c.l.b16 %v186
  %v683 = vunpack.c.l.b16 %v187
  %v684 = vunpack.c.l.b16 %v188
  %v685 = vunpack.c.l.b16 %v189
  %v686 = vpack.c.b16 %v579, %v578
  %v687 = vpack.c.b16 %v581, %v580
  %v688 = vpack.c.b16 %v583, %v582
  %v689 = vpack.c.b16 %v585, %v584
  %v690 = vpack.c.b16 %v587, %v586
  %v691 = vpack.c.b16 %v589, %v588
  %v692 = vpack.c.b16 %v591, %v590
  %v693 = vpack.c.b16 %v593, %v592
  %v694 = vpack.c.b16 %v595, %v594
  %v695 = vpack.c.b16 %v597, %v596
  %v696 = vpack.c.b16 %v599, %v598
  %v697 = vpack.c.b16 %v601, %v600
  %v698 = vpack.c.b16 %v603, %v602
  %v699 = vpack.c.b16 %v605, %v604
  %v700 = vpack.c.b16 %v607, %v606
  %v701 = vpack.c.b16 %v609, %v608
  %v702 = vpack.c.b16 %v611, %v610
  %v703 = vpack.c.b16 %v613, %v612
  %v704 = vpack.c.b16 %v615, %v614
  %v705 = vpack.c.b16 %v617, %v616
  %v706 = vpack.c.b16 %v619, %v618
  %v707 = vpack.c.b16 %v621, %v620
  %v708 = vpack.c.b16 %v623, %v622
  %v709 = vpack.c.b16 %v625, %v624
  %v710 = vpack.c.b16 %v627, %v626
  %v711 = vpack.c.b16 %v629, %v628
  %v712 = vpack.c.b16 %v631, %v630
  %v713 = vpack.c.b16 %v633, %v632
  %v714 = vpack.c.b16 %v635, %v634
  %v715 = vpack.c.b16 %v637, %v636
  %v716 = vpack.c.b16 %v639, %v638
  %v717 = vpack.c.b16 %v641, %v640
  %v718 = vpack.c.b16 %v643, %v642
  %v719 = vpack.c.b16 %v645, %v644
  %v720 = vpack.c.b16 %v647, %v646
  %v721 = vpack.c.b16 %v649, %v648
  %v722 = vpack.c.b16 %v651, %v650
  %v723 = vpack.c.b16 %v653, %v652
  %v724 = vpack.c.b16 %v655, %v654
  %v725 = vpack.c.b16 %v657, %v656
  %v726 = vpack.c.b16 %v659, %v658
  %v727 = vpack.c.b16 %v661, %v660
  %v728 = vpack.c.b16 %v663, %v662
  %v729 = vpack.c.b16 %v665, %v664
  %v730 = vpack.c.b16 %v667, %v666
  %v731 = vpack.c.b16 %v669, %v668
  %v732 = vpack.c.b16 %v671, %v670
  %v733 = vpack.c.b16 %v673, %v672
  %v734 = vpack.c.b16 %v675, %v674
  %v735 = vpack.c.b16 %v677, %v676
  %v736 = vpack.c.b16 %v679, %v678
  %v737 = vpack.c.b16 %v681, %v680
  %v738 = vpack.c.b16 %v683, %v682
  %v739 = vpack.c.b16 %v685, %v684
  %vm794 = vcmask 785408
  %v796 = vsel %vm794, %v372, 0
  %v799 = vsel %vm794, %v379, 0
  %v802 = vsel %vm794, %v386, 0
  %v805 = vsel %vm794, %v393, 0
  %v808 = vsel %vm794, %v400, 0
  %v811 = vsel %vm794, %v407, 0
  %v814 = vsel %vm794, %v414, 0
  %v817 = vsel %vm794, %v421, 0
  %819 = vmatprep.subr.bf16.mxu0 0
  %820 = vmatpush1.bf16.msra.mxu0 %v693
  %821 = vmatprep.subr.bf16.mxu0 0
  %822 = vmatpush1.bf16.msra.mxu0 %v692
  %823 = vmatprep.subr.bf16.mxu0 0
  %824 = vmatpush1.bf16.msra.mxu0 %v691
  %825 = vmatprep.subr.bf16.mxu0 0
  %826 = vmatpush1.bf16.msra.mxu0 %v690
  %827 = vmatprep.subr.bf16.mxu0 0
  %828 = vmatpush1.bf16.msra.mxu0 %v689
  %829 = vmatprep.subr.bf16.mxu0 0
  %830 = vmatpush1.bf16.msra.mxu0 %v688
  %831 = vmatprep.subr.bf16.mxu0 0
  %832 = vmatpush1.bf16.msra.mxu0 %v687
  %833 = vmatprep.subr.bf16.mxu0 0
  %834 = vmatpush1.bf16.msra.mxu0 %v686
  %835 = vmatprep.subr.bf16.mxu0 0
  %836 = vmatpush2.bf16.msra.mxu0 %v701
  %837 = vmatprep.subr.bf16.mxu0 0
  %838 = vmatpush2.bf16.msra.mxu0 %v700
  %839 = vmatprep.subr.bf16.mxu0 0
  %840 = vmatpush2.bf16.msra.mxu0 %v699
  %841 = vmatprep.subr.bf16.mxu0 0
  %842 = vmatpush2.bf16.msra.mxu0 %v698
  %843 = vmatprep.subr.bf16.mxu0 0
  %844 = vmatpush2.bf16.msra.mxu0 %v697
  %845 = vmatprep.subr.bf16.mxu0 0
  %846 = vmatpush2.bf16.msra.mxu0 %v696
  %847 = vmatprep.subr.bf16.mxu0 0
  %848 = vmatpush2.bf16.msra.mxu0 %v695
  %849 = vmatprep.subr.bf16.mxu0 0
  %850 = vmatpush2.bf16.msra.mxu0 %v694
  %851 = vmatprep.mubr.bf16.mxu0 %v367
  %852 = vmatmul.mubr.bf16.gmra.mxu0 %v366
  %v853 = vpop.f32.mrf.mxu0
  %v854 = vadd.f32 0.0, %v853
  %v855 = vpop.f32.mrf.mxu0
  %v856 = vpop.f32.mrf.mxu0
  %v857 = vadd.f32 0.0, %v856
  %v858 = vpop.f32.mrf.mxu0
  %859 = vmatprep.mubr.bf16.mxu0 %v374
  %860 = vmatmul.mubr.bf16.gmra.mxu0 %v373
  %v861 = vpop.f32.mrf.mxu0
  %v862 = vadd.f32 0.0, %v861
  %v863 = vpop.f32.mrf.mxu0
  %v864 = vpop.f32.mrf.mxu0
  %v865 = vadd.f32 0.0, %v864
  %v866 = vpop.f32.mrf.mxu0
  %867 = vmatprep.mubr.bf16.mxu0 %v381
  %868 = vmatmul.mubr.bf16.gmra.mxu0 %v380
  %v869 = vpop.f32.mrf.mxu0
  %v870 = vadd.f32 0.0, %v869
  %v871 = vpop.f32.mrf.mxu0
  %v872 = vpop.f32.mrf.mxu0
  %v873 = vadd.f32 0.0, %v872
  %v874 = vpop.f32.mrf.mxu0
  %875 = vmatprep.mubr.bf16.mxu0 %v388
  %876 = vmatmul.mubr.bf16.gmra.mxu0 %v387
  %v877 = vpop.f32.mrf.mxu0
  %v878 = vadd.f32 0.0, %v877
  %v879 = vpop.f32.mrf.mxu0
  %v880 = vpop.f32.mrf.mxu0
  %v881 = vadd.f32 0.0, %v880
  %v882 = vpop.f32.mrf.mxu0
  %883 = vmatprep.mubr.bf16.mxu0 %v395
  %884 = vmatmul.mubr.bf16.gmra.mxu0 %v394
  %v885 = vpop.f32.mrf.mxu0
  %v886 = vadd.f32 0.0, %v885
  %v887 = vpop.f32.mrf.mxu0
  %v888 = vpop.f32.mrf.mxu0
  %v889 = vadd.f32 0.0, %v888
  %v890 = vpop.f32.mrf.mxu0
  %891 = vmatprep.mubr.bf16.mxu0 %v402
  %892 = vmatmul.mubr.bf16.gmra.mxu0 %v401
  %v893 = vpop.f32.mrf.mxu0
  %v894 = vadd.f32 0.0, %v893
  %v895 = vpop.f32.mrf.mxu0
  %v896 = vpop.f32.mrf.mxu0
  %v897 = vadd.f32 0.0, %v896
  %v898 = vpop.f32.mrf.mxu0
  %899 = vmatprep.mubr.bf16.mxu0 %v409
  %900 = vmatmul.mubr.bf16.gmra.mxu0 %v408
  %v901 = vpop.f32.mrf.mxu0
  %v902 = vadd.f32 0.0, %v901
  %v903 = vpop.f32.mrf.mxu0
  %v904 = vpop.f32.mrf.mxu0
  %v905 = vadd.f32 0.0, %v904
  %v906 = vpop.f32.mrf.mxu0
  %907 = vmatprep.mubr.bf16.mxu0 %v416
  %908 = vmatmul.mubr.bf16.gmra.mxu0 %v415
  %v909 = vpop.f32.mrf.mxu0
  %v910 = vadd.f32 0.0, %v909
  %v911 = vpop.f32.mrf.mxu0
  %v912 = vpop.f32.mrf.mxu0
  %v913 = vadd.f32 0.0, %v912
  %v914 = vpop.f32.mrf.mxu0
  %915 = vdwg.mxu0
  %916 = vmatprep.subr.bf16.mxu0 0
  %917 = vmatpush1.bf16.msra.mxu0 %v709
  %918 = vmatprep.subr.bf16.mxu0 0
  %919 = vmatpush1.bf16.msra.mxu0 %v708
  %920 = vmatprep.subr.bf16.mxu0 0
  %921 = vmatpush1.bf16.msra.mxu0 %v707
  %922 = vmatprep.subr.bf16.mxu0 0
  %923 = vmatpush1.bf16.msra.mxu0 %v706
  %924 = vmatprep.subr.bf16.mxu0 0
  %925 = vmatpush1.bf16.msra.mxu0 %v705
  %926 = vmatprep.subr.bf16.mxu0 0
  %927 = vmatpush1.bf16.msra.mxu0 %v704
  %928 = vmatprep.subr.bf16.mxu0 0
  %929 = vmatpush1.bf16.msra.mxu0 %v703
  %930 = vmatprep.subr.bf16.mxu0 0
  %931 = vmatpush1.bf16.msra.mxu0 %v702
  %932 = vmatprep.subr.bf16.mxu0 0
  %933 = vmatpush2.bf16.msra.mxu0 %v717
  %934 = vmatprep.subr.bf16.mxu0 0
  %935 = vmatpush2.bf16.msra.mxu0 %v716
  %936 = vmatprep.subr.bf16.mxu0 0
  %937 = vmatpush2.bf16.msra.mxu0 %v715
  %938 = vmatprep.subr.bf16.mxu0 0
  %939 = vmatpush2.bf16.msra.mxu0 %v714
  %940 = vmatprep.subr.bf16.mxu0 0
  %941 = vmatpush2.bf16.msra.mxu0 %v713
  %942 = vmatprep.subr.bf16.mxu0 0
  %943 = vmatpush2.bf16.msra.mxu0 %v712
  %944 = vmatprep.subr.bf16.mxu0 0
  %945 = vmatpush2.bf16.msra.mxu0 %v711
  %946 = vmatprep.subr.bf16.mxu0 0
  %947 = vmatpush2.bf16.msra.mxu0 %v710
  %948 = vmatprep.mubr.bf16.mxu0 %v369
  %949 = vmatmul.mubr.bf16.gmra.mxu0 %v368
  %v950 = vpop.f32.mrf.mxu0
  %v951 = vadd.f32 %v854, %v950
  %v952 = vpop.f32.mrf.mxu0
  %v953 = vpop.f32.mrf.mxu0
  %v954 = vadd.f32 %v857, %v953
  %v955 = vpop.f32.mrf.mxu0
  %956 = vmatprep.mubr.bf16.mxu0 %v376
  %957 = vmatmul.mubr.bf16.gmra.mxu0 %v375
  %v958 = vpop.f32.mrf.mxu0
  %v959 = vadd.f32 %v862, %v958
  %v960 = vpop.f32.mrf.mxu0
  %v961 = vpop.f32.mrf.mxu0
  %v962 = vadd.f32 %v865, %v961
  %v963 = vpop.f32.mrf.mxu0
  %964 = vmatprep.mubr.bf16.mxu0 %v383
  %965 = vmatmul.mubr.bf16.gmra.mxu0 %v382
  %v966 = vpop.f32.mrf.mxu0
  %v967 = vadd.f32 %v870, %v966
  %v968 = vpop.f32.mrf.mxu0
  %v969 = vpop.f32.mrf.mxu0
  %v970 = vadd.f32 %v873, %v969
  %v971 = vpop.f32.mrf.mxu0
  %972 = vmatprep.mubr.bf16.mxu0 %v390
  %973 = vmatmul.mubr.bf16.gmra.mxu0 %v389
  %v974 = vpop.f32.mrf.mxu0
  %v975 = vadd.f32 %v878, %v974
  %v976 = vpop.f32.mrf.mxu0
  %v977 = vpop.f32.mrf.mxu0
  %v978 = vadd.f32 %v881, %v977
  %v979 = vpop.f32.mrf.mxu0
  %980 = vmatprep.mubr.bf16.mxu0 %v397
  %981 = vmatmul.mubr.bf16.gmra.mxu0 %v396
  %v982 = vpop.f32.mrf.mxu0
  %v983 = vadd.f32 %v886, %v982
  %v984 = vpop.f32.mrf.mxu0
  %v985 = vpop.f32.mrf.mxu0
  %v986 = vadd.f32 %v889, %v985
  %v987 = vpop.f32.mrf.mxu0
  %988 = vmatprep.mubr.bf16.mxu0 %v404
  %989 = vmatmul.mubr.bf16.gmra.mxu0 %v403
  %v990 = vpop.f32.mrf.mxu0
  %v991 = vadd.f32 %v894, %v990
  %v992 = vpop.f32.mrf.mxu0
  %v993 = vpop.f32.mrf.mxu0
  %v994 = vadd.f32 %v897, %v993
  %v995 = vpop.f32.mrf.mxu0
  %996 = vmatprep.mubr.bf16.mxu0 %v411
  %997 = vmatmul.mubr.bf16.gmra.mxu0 %v410
  %v998 = vpop.f32.mrf.mxu0
  %v999 = vadd.f32 %v902, %v998
  %v1000 = vpop.f32.mrf.mxu0
  %v1001 = vpop.f32.mrf.mxu0
  %v1002 = vadd.f32 %v905, %v1001
  %v1003 = vpop.f32.mrf.mxu0
  %1004 = vmatprep.mubr.bf16.mxu0 %v418
  %1005 = vmatmul.mubr.bf16.gmra.mxu0 %v417
  %v1006 = vpop.f32.mrf.mxu0
  %v1007 = vadd.f32 %v910, %v1006
  %v1008 = vpop.f32.mrf.mxu0
  %v1009 = vpop.f32.mrf.mxu0
  %v1010 = vadd.f32 %v913, %v1009
  %v1011 = vpop.f32.mrf.mxu0
  %1012 = vdwg.mxu0
  %1013 = vmatprep.subr.bf16.mxu0 0
  %1014 = vmatpush1.bf16.msra.mxu0 %v725
  %1015 = vmatprep.subr.bf16.mxu0 0
  %1016 = vmatpush1.bf16.msra.mxu0 %v724
  %1017 = vmatprep.subr.bf16.mxu0 0
  %1018 = vmatpush1.bf16.msra.mxu0 %v723
  %1019 = vmatprep.subr.bf16.mxu0 0
  %1020 = vmatpush1.bf16.msra.mxu0 %v722
  %1021 = vmatprep.subr.bf16.mxu0 0
  %1022 = vmatpush1.bf16.msra.mxu0 %v721
  %1023 = vmatprep.subr.bf16.mxu0 0
  %1024 = vmatpush1.bf16.msra.mxu0 %v720
  %1025 = vmatprep.subr.bf16.mxu0 0
  %1026 = vmatpush1.bf16.msra.mxu0 %v719
  %1027 = vmatprep.subr.bf16.mxu0 0
  %1028 = vmatpush1.bf16.msra.mxu0 %v718
  %1029 = vmatprep.subr.bf16.mxu0 0
  %1030 = vmatpush2.bf16.msra.mxu0 %v733
  %1031 = vmatprep.subr.bf16.mxu0 0
  %1032 = vmatpush2.bf16.msra.mxu0 %v732
  %1033 = vmatprep.subr.bf16.mxu0 0
  %1034 = vmatpush2.bf16.msra.mxu0 %v731
  %1035 = vmatprep.subr.bf16.mxu0 0
  %1036 = vmatpush2.bf16.msra.mxu0 %v730
  %1037 = vmatprep.subr.bf16.mxu0 0
  %1038 = vmatpush2.bf16.msra.mxu0 %v729
  %1039 = vmatprep.subr.bf16.mxu0 0
  %1040 = vmatpush2.bf16.msra.mxu0 %v728
  %1041 = vmatprep.subr.bf16.mxu0 0
  %1042 = vmatpush2.bf16.msra.mxu0 %v727
  %1043 = vmatprep.subr.bf16.mxu0 0
  %1044 = vmatpush2.bf16.msra.mxu0 %v726
  %1045 = vmatprep.mubr.bf16.mxu0 %v371
  %1046 = vmatmul.mubr.bf16.gmra.mxu0 %v370
  %v1047 = vpop.f32.mrf.mxu0
  %v1048 = vadd.f32 %v951, %v1047
  %v1049 = vpop.f32.mrf.mxu0
  %v1050 = vpop.f32.mrf.mxu0
  %v1051 = vadd.f32 %v954, %v1050
  %v1052 = vpop.f32.mrf.mxu0
  %1053 = vmatprep.mubr.bf16.mxu0 %v378
  %1054 = vmatmul.mubr.bf16.gmra.mxu0 %v377
  %v1055 = vpop.f32.mrf.mxu0
  %v1056 = vadd.f32 %v959, %v1055
  %v1057 = vpop.f32.mrf.mxu0
  %v1058 = vpop.f32.mrf.mxu0
  %v1059 = vadd.f32 %v962, %v1058
  %v1060 = vpop.f32.mrf.mxu0
  %1061 = vmatprep.mubr.bf16.mxu0 %v385
  %1062 = vmatmul.mubr.bf16.gmra.mxu0 %v384
  %v1063 = vpop.f32.mrf.mxu0
  %v1064 = vadd.f32 %v967, %v1063
  %v1065 = vpop.f32.mrf.mxu0
  %v1066 = vpop.f32.mrf.mxu0
  %v1067 = vadd.f32 %v970, %v1066
  %v1068 = vpop.f32.mrf.mxu0
  %1069 = vmatprep.mubr.bf16.mxu0 %v392
  %1070 = vmatmul.mubr.bf16.gmra.mxu0 %v391
  %v1071 = vpop.f32.mrf.mxu0
  %v1072 = vadd.f32 %v975, %v1071
  %v1073 = vpop.f32.mrf.mxu0
  %v1074 = vpop.f32.mrf.mxu0
  %v1075 = vadd.f32 %v978, %v1074
  %v1076 = vpop.f32.mrf.mxu0
  %1077 = vmatprep.mubr.bf16.mxu0 %v399
  %1078 = vmatmul.mubr.bf16.gmra.mxu0 %v398
  %v1079 = vpop.f32.mrf.mxu0
  %v1080 = vadd.f32 %v983, %v1079
  %v1081 = vpop.f32.mrf.mxu0
  %v1082 = vpop.f32.mrf.mxu0
  %v1083 = vadd.f32 %v986, %v1082
  %v1084 = vpop.f32.mrf.mxu0
  %1085 = vmatprep.mubr.bf16.mxu0 %v406
  %1086 = vmatmul.mubr.bf16.gmra.mxu0 %v405
  %v1087 = vpop.f32.mrf.mxu0
  %v1088 = vadd.f32 %v991, %v1087
  %v1089 = vpop.f32.mrf.mxu0
  %v1090 = vpop.f32.mrf.mxu0
  %v1091 = vadd.f32 %v994, %v1090
  %v1092 = vpop.f32.mrf.mxu0
  %1093 = vmatprep.mubr.bf16.mxu0 %v413
  %1094 = vmatmul.mubr.bf16.gmra.mxu0 %v412
  %v1095 = vpop.f32.mrf.mxu0
  %v1096 = vadd.f32 %v999, %v1095
  %v1097 = vpop.f32.mrf.mxu0
  %v1098 = vpop.f32.mrf.mxu0
  %v1099 = vadd.f32 %v1002, %v1098
  %v1100 = vpop.f32.mrf.mxu0
  %1101 = vmatprep.mubr.bf16.mxu0 %v420
  %1102 = vmatmul.mubr.bf16.gmra.mxu0 %v419
  %v1103 = vpop.f32.mrf.mxu0
  %v1104 = vadd.f32 %v1007, %v1103
  %v1105 = vpop.f32.mrf.mxu0
  %v1106 = vpop.f32.mrf.mxu0
  %v1107 = vadd.f32 %v1010, %v1106
  %v1108 = vpop.f32.mrf.mxu0
  %1109 = vdwg.mxu0
  %1110 = vmatprep.subr.bf16.mxu0 0
  %1111 = vmatpush1.bf16.msra.mxu0 0
  %1112 = vmatprep.subr.bf16.mxu0 0
  %1113 = vmatpush1.bf16.msra.mxu0 0
  %1114 = vmatprep.subr.bf16.mxu0 0
  %1115 = vmatpush1.bf16.msra.mxu0 %v739
  %1116 = vmatprep.subr.bf16.mxu0 0
  %1117 = vmatpush1.bf16.msra.mxu0 %v738
  %1118 = vmatprep.subr.bf16.mxu0 0
  %1119 = vmatpush1.bf16.msra.mxu0 %v737
  %1120 = vmatprep.subr.bf16.mxu0 0
  %1121 = vmatpush1.bf16.msra.mxu0 %v736
  %1122 = vmatprep.subr.bf16.mxu0 0
  %1123 = vmatpush1.bf16.msra.mxu0 %v735
  %1124 = vmatprep.subr.bf16.mxu0 0
  %1125 = vmatpush1.bf16.msra.mxu0 %v734
  %1126 = vmatprep.subr.bf16.mxu0 0
  %1127 = vmatpush2.bf16.msra.mxu0 0
  %1128 = vmatprep.subr.bf16.mxu0 0
  %1129 = vmatpush2.bf16.msra.mxu0 0
  %1130 = vmatprep.subr.bf16.mxu0 0
  %1131 = vmatpush2.bf16.msra.mxu0 0
  %1132 = vmatprep.subr.bf16.mxu0 0
  %1133 = vmatpush2.bf16.msra.mxu0 0
  %1134 = vmatprep.subr.bf16.mxu0 0
  %1135 = vmatpush2.bf16.msra.mxu0 0
  %1136 = vmatprep.subr.bf16.mxu0 0
  %1137 = vmatpush2.bf16.msra.mxu0 0
  %1138 = vmatprep.subr.bf16.mxu0 0
  %1139 = vmatpush2.bf16.msra.mxu0 0
  %1140 = vmatprep.subr.bf16.mxu0 0
  %1141 = vmatpush2.bf16.msra.mxu0 0
  %1142 = vmatprep.mubr.bf16.mxu0 0
  %1143 = vmatmul.mubr.bf16.gmra.mxu0 %v796
  %v1144 = vpop.f32.mrf.mxu0
  %v1145 = vadd.f32 %v1048, %v1144
  %v1146 = vpop.f32.mrf.mxu0
  %v1147 = vpop.f32.mrf.mxu0
  %v1148 = vadd.f32 %v1051, %v1147
  %v1149 = vpop.f32.mrf.mxu0
  %1150 = vmatprep.mubr.bf16.mxu0 0
  %1151 = vmatmul.mubr.bf16.gmra.mxu0 %v799
  %v1152 = vpop.f32.mrf.mxu0
  %v1153 = vadd.f32 %v1056, %v1152
  %v1154 = vpop.f32.mrf.mxu0
  %v1155 = vpop.f32.mrf.mxu0
  %v1156 = vadd.f32 %v1059, %v1155
  %v1157 = vpop.f32.mrf.mxu0
  %1158 = vmatprep.mubr.bf16.mxu0 0
  %1159 = vmatmul.mubr.bf16.gmra.mxu0 %v802
  %v1160 = vpop.f32.mrf.mxu0
  %v1161 = vadd.f32 %v1064, %v1160
  %v1162 = vpop.f32.mrf.mxu0
  %v1163 = vpop.f32.mrf.mxu0
  %v1164 = vadd.f32 %v1067, %v1163
  %v1165 = vpop.f32.mrf.mxu0
  %1166 = vmatprep.mubr.bf16.mxu0 0
  %1167 = vmatmul.mubr.bf16.gmra.mxu0 %v805
  %v1168 = vpop.f32.mrf.mxu0
  %v1169 = vadd.f32 %v1072, %v1168
  %v1170 = vpop.f32.mrf.mxu0
  %v1171 = vpop.f32.mrf.mxu0
  %v1172 = vadd.f32 %v1075, %v1171
  %v1173 = vpop.f32.mrf.mxu0
  %1174 = vmatprep.mubr.bf16.mxu0 0
  %1175 = vmatmul.mubr.bf16.gmra.mxu0 %v808
  %v1176 = vpop.f32.mrf.mxu0
  %v1177 = vadd.f32 %v1080, %v1176
  %v1178 = vpop.f32.mrf.mxu0
  %v1179 = vpop.f32.mrf.mxu0
  %v1180 = vadd.f32 %v1083, %v1179
  %v1181 = vpop.f32.mrf.mxu0
  %1182 = vmatprep.mubr.bf16.mxu0 0
  %1183 = vmatmul.mubr.bf16.gmra.mxu0 %v811
  %v1184 = vpop.f32.mrf.mxu0
  %v1185 = vadd.f32 %v1088, %v1184
  %v1186 = vpop.f32.mrf.mxu0
  %v1187 = vpop.f32.mrf.mxu0
  %v1188 = vadd.f32 %v1091, %v1187
  %v1189 = vpop.f32.mrf.mxu0
  %1190 = vmatprep.mubr.bf16.mxu0 0
  %1191 = vmatmul.mubr.bf16.gmra.mxu0 %v814
  %v1192 = vpop.f32.mrf.mxu0
  %v1193 = vadd.f32 %v1096, %v1192
  %v1194 = vpop.f32.mrf.mxu0
  %v1195 = vpop.f32.mrf.mxu0
  %v1196 = vadd.f32 %v1099, %v1195
  %v1197 = vpop.f32.mrf.mxu0
  %1198 = vmatprep.mubr.bf16.mxu0 0
  %1199 = vmatmul.mubr.bf16.gmra.mxu0 %v817
  %v1200 = vpop.f32.mrf.mxu0
  %v1201 = vadd.f32 %v1104, %v1200
  %v1202 = vpop.f32.mrf.mxu0
  %v1203 = vpop.f32.mrf.mxu0
  %v1204 = vadd.f32 %v1107, %v1203
  %v1205 = vpop.f32.mrf.mxu0
  %1206 = vdwg.mxu0
  %v1207 = vpack.c.bf16 %v1148, %v1145
  %v1208 = vpack.c.bf16 %v1156, %v1153
  %v1209 = vpack.c.bf16 %v1164, %v1161
  %v1210 = vpack.c.bf16 %v1172, %v1169
  %v1211 = vpack.c.bf16 %v1180, %v1177
  %v1212 = vpack.c.bf16 %v1188, %v1185
  %v1213 = vpack.c.bf16 %v1196, %v1193
  %v1214 = vpack.c.bf16 %v1204, %v1201
  %v1215 = vld [vmem:[%s2] sm:$0xf]
  %v1216 = vld [vmem:[%s2 + $0x4] sm:$0xf]
  %v1217 = vld [vmem:[%s2 + $0x8] sm:$0xf]
  %v1218 = vld [vmem:[%s2 + $0xc] sm:$0xf]
  %v1219 = vld [vmem:[%s2 + $0x10] sm:$0xf]
  %v1220 = vld [vmem:[%s2 + $0x14] sm:$0xf]
  %v1221 = vld [vmem:[%s2 + $0x18] sm:$0xf]
  %v1222 = vld [vmem:[%s2 + $0x1c] sm:$0xf]
  %v1223 = vld [vmem:[%s3] sm:$0x1]
  %v1225 = vlaneseq
  %v1226 = vshrl.u32 %v1225, 7
  %v1227 = vsub.s32 0, %v1226
  %v1228 = vrot.slane %v1223, %v1227
  %v1238 = vunpack.c.l.b16 %v1215
  %v1239 = vunpack.c.l.b16 %v1216
  %v1240 = vunpack.c.l.b16 %v1217
  %v1241 = vunpack.c.l.b16 %v1218
  %v1242 = vunpack.c.l.b16 %v1219
  %v1243 = vunpack.c.l.b16 %v1220
  %v1244 = vunpack.c.l.b16 %v1221
  %v1245 = vunpack.c.l.b16 %v1222
  %v1246 = vpack.c.b16 %v1239, %v1238
  %v1247 = vpack.c.b16 %v1241, %v1240
  %v1248 = vpack.c.b16 %v1243, %v1242
  %v1249 = vpack.c.b16 %v1245, %v1244
  %vm1254 = vcmask 523264
  %v1256 = vsel %vm1254, %v1207, 0
  %v1259 = vsel %vm1254, %v1208, 0
  %v1262 = vsel %vm1254, %v1209, 0
  %v1265 = vsel %vm1254, %v1210, 0
  %v1268 = vsel %vm1254, %v1211, 0
  %v1271 = vsel %vm1254, %v1212, 0
  %v1274 = vsel %vm1254, %v1213, 0
  %v1277 = vsel %vm1254, %v1214, 0
  %1279 = vmatprep.subr.bf16.mxu0 0
  %1280 = vmatpush1.bf16.msra.mxu0 0
  %1281 = vmatprep.subr.bf16.mxu0 0
  %1282 = vmatpush1.bf16.msra.mxu0 0
  %1283 = vmatprep.subr.bf16.mxu0 0
  %1284 = vmatpush1.bf16.msra.mxu0 0
  %1285 = vmatprep.subr.bf16.mxu0 0
  %1286 = vmatpush1.bf16.msra.mxu0 0
  %1287 = vmatprep.subr.bf16.mxu0 0
  %1288 = vmatpush1.bf16.msra.mxu0 %v1249
  %1289 = vmatprep.subr.bf16.mxu0 0
  %1290 = vmatpush1.bf16.msra.mxu0 %v1248
  %1291 = vmatprep.subr.bf16.mxu0 0
  %1292 = vmatpush1.bf16.msra.mxu0 %v1247
  %1293 = vmatprep.subr.bf16.mxu0 0
  %1294 = vmatpush1.bf16.msra.mxu0 %v1246
  %1295 = vmatprep.subr.bf16.mxu0 0
  %1296 = vmatpush2.bf16.msra.mxu0 0
  %1297 = vmatprep.subr.bf16.mxu0 0
  %1298 = vmatpush2.bf16.msra.mxu0 0
  %1299 = vmatprep.subr.bf16.mxu0 0
  %1300 = vmatpush2.bf16.msra.mxu0 0
  %1301 = vmatprep.subr.bf16.mxu0 0
  %1302 = vmatpush2.bf16.msra.mxu0 0
  %1303 = vmatprep.subr.bf16.mxu0 0
  %1304 = vmatpush2.bf16.msra.mxu0 0
  %1305 = vmatprep.subr.bf16.mxu0 0
  %1306 = vmatpush2.bf16.msra.mxu0 0
  %1307 = vmatprep.subr.bf16.mxu0 0
  %1308 = vmatpush2.bf16.msra.mxu0 0
  %1309 = vmatprep.subr.bf16.mxu0 0
  %1310 = vmatpush2.bf16.msra.mxu0 0
  %1311 = vmatprep.mubr.bf16.mxu0 0
  %1312 = vmatmul.mubr.bf16.gmra.mxu0 %v1256
  %v1313 = vpop.f32.mrf.mxu0
  %v1314 = vadd.f32 %v1228, %v1313
  %v1315 = vpop.f32.mrf.mxu0
  %v1316 = vpop.f32.mrf.mxu0
  %v1317 = vadd.f32 %v1228, %v1316
  %v1318 = vpop.f32.mrf.mxu0
  %1319 = vmatprep.mubr.bf16.mxu0 0
  %1320 = vmatmul.mubr.bf16.gmra.mxu0 %v1259
  %v1321 = vpop.f32.mrf.mxu0
  %v1322 = vadd.f32 %v1228, %v1321
  %v1323 = vpop.f32.mrf.mxu0
  %v1324 = vpop.f32.mrf.mxu0
  %v1325 = vadd.f32 %v1228, %v1324
  %v1326 = vpop.f32.mrf.mxu0
  %1327 = vmatprep.mubr.bf16.mxu0 0
  %1328 = vmatmul.mubr.bf16.gmra.mxu0 %v1262
  %v1329 = vpop.f32.mrf.mxu0
  %v1330 = vadd.f32 %v1228, %v1329
  %v1331 = vpop.f32.mrf.mxu0
  %v1332 = vpop.f32.mrf.mxu0
  %v1333 = vadd.f32 %v1228, %v1332
  %v1334 = vpop.f32.mrf.mxu0
  %1335 = vmatprep.mubr.bf16.mxu0 0
  %1336 = vmatmul.mubr.bf16.gmra.mxu0 %v1265
  %v1337 = vpop.f32.mrf.mxu0
  %v1338 = vadd.f32 %v1228, %v1337
  %v1339 = vpop.f32.mrf.mxu0
  %v1340 = vpop.f32.mrf.mxu0
  %v1341 = vadd.f32 %v1228, %v1340
  %v1342 = vpop.f32.mrf.mxu0
  %1343 = vmatprep.mubr.bf16.mxu0 0
  %1344 = vmatmul.mubr.bf16.gmra.mxu0 %v1268
  %v1345 = vpop.f32.mrf.mxu0
  %v1346 = vadd.f32 %v1228, %v1345
  %v1347 = vpop.f32.mrf.mxu0
  %v1348 = vpop.f32.mrf.mxu0
  %v1349 = vadd.f32 %v1228, %v1348
  %v1350 = vpop.f32.mrf.mxu0
  %1351 = vmatprep.mubr.bf16.mxu0 0
  %1352 = vmatmul.mubr.bf16.gmra.mxu0 %v1271
  %v1353 = vpop.f32.mrf.mxu0
  %v1354 = vadd.f32 %v1228, %v1353
  %v1355 = vpop.f32.mrf.mxu0
  %v1356 = vpop.f32.mrf.mxu0
  %v1357 = vadd.f32 %v1228, %v1356
  %v1358 = vpop.f32.mrf.mxu0
  %1359 = vmatprep.mubr.bf16.mxu0 0
  %1360 = vmatmul.mubr.bf16.gmra.mxu0 %v1274
  %v1361 = vpop.f32.mrf.mxu0
  %v1362 = vadd.f32 %v1228, %v1361
  %v1363 = vpop.f32.mrf.mxu0
  %v1364 = vpop.f32.mrf.mxu0
  %v1365 = vadd.f32 %v1228, %v1364
  %v1366 = vpop.f32.mrf.mxu0
  %1367 = vmatprep.mubr.bf16.mxu0 0
  %1368 = vmatmul.mubr.bf16.gmra.mxu0 %v1277
  %v1369 = vpop.f32.mrf.mxu0
  %v1370 = vadd.f32 %v1228, %v1369
  %v1371 = vpop.f32.mrf.mxu0
  %v1372 = vpop.f32.mrf.mxu0
  %v1373 = vadd.f32 %v1228, %v1372
  %v1374 = vpop.f32.mrf.mxu0
  %1375 = vdwg.mxu0
  %v1376 = vpack.c.bf16 %v1317, %v1314
  %v1377 = vpack.c.bf16 %v1325, %v1322
  %v1378 = vpack.c.bf16 %v1333, %v1330
  %v1379 = vpack.c.bf16 %v1341, %v1338
  %v1380 = vpack.c.bf16 %v1349, %v1346
  %v1381 = vpack.c.bf16 %v1357, %v1354
  %v1382 = vpack.c.bf16 %v1365, %v1362
  %v1383 = vpack.c.bf16 %v1373, %v1370
  %v1392 = vunpack.c.l.b16 %v1376
  %v1393 = vunpack.c.h.b16 %v1376
  %v1394 = vunpack.c.l.b16 %v1377
  %v1395 = vunpack.c.h.b16 %v1377
  %v1396 = vunpack.c.l.b16 %v1378
  %v1397 = vunpack.c.h.b16 %v1378
  %v1398 = vunpack.c.l.b16 %v1379
  %v1399 = vunpack.c.h.b16 %v1379
  %v1400 = vunpack.c.l.b16 %v1380
  %v1401 = vunpack.c.h.b16 %v1380
  %v1402 = vunpack.c.l.b16 %v1381
  %v1403 = vunpack.c.h.b16 %v1381
  %v1404 = vunpack.c.l.b16 %v1382
  %v1405 = vunpack.c.h.b16 %v1382
  %v1406 = vunpack.c.l.b16 %v1383
  %v1407 = vunpack.c.h.b16 %v1383
  %v1408 = vpack.c.b16 %v1392, %v1392
  %v1409 = vpack.c.b16 %v1393, %v1393
  %v1410 = vpack.c.b16 %v1394, %v1394
  %v1411 = vpack.c.b16 %v1395, %v1395
  %v1412 = vpack.c.b16 %v1396, %v1396
  %v1413 = vpack.c.b16 %v1397, %v1397
  %v1414 = vpack.c.b16 %v1398, %v1398
  %v1415 = vpack.c.b16 %v1399, %v1399
  %v1416 = vpack.c.b16 %v1400, %v1400
  %v1417 = vpack.c.b16 %v1401, %v1401
  %v1418 = vpack.c.b16 %v1402, %v1402
  %v1419 = vpack.c.b16 %v1403, %v1403
  %v1420 = vpack.c.b16 %v1404, %v1404
  %v1421 = vpack.c.b16 %v1405, %v1405
  %v1422 = vpack.c.b16 %v1406, %v1406
  %v1423 = vpack.c.b16 %v1407, %v1407
  %1440 = vst [vmem:[%s4] sm:$0xf] %v1408
  %1441 = vst [vmem:[%s4 + $0x4] sm:$0xf] %v1409
  %1442 = vst [vmem:[%s4 + $0x8] sm:$0xf] %v1410
  %1443 = vst [vmem:[%s4 + $0xc] sm:$0xf] %v1411
  %1444 = vst [vmem:[%s4 + $0x10] sm:$0xf] %v1412
  %1445 = vst [vmem:[%s4 + $0x14] sm:$0xf] %v1413
  %1446 = vst [vmem:[%s4 + $0x18] sm:$0xf] %v1414
  %1447 = vst [vmem:[%s4 + $0x1c] sm:$0xf] %v1415
  %1448 = vst [vmem:[%s4 + $0x20] sm:$0xf] %v1416
  %1449 = vst [vmem:[%s4 + $0x24] sm:$0xf] %v1417
  %1450 = vst [vmem:[%s4 + $0x28] sm:$0xf] %v1418
  %1451 = vst [vmem:[%s4 + $0x2c] sm:$0xf] %v1419
  %1452 = vst [vmem:[%s4 + $0x30] sm:$0xf] %v1420
  %1453 = vst [vmem:[%s4 + $0x34] sm:$0xf] %v1421
  %1454 = vst [vmem:[%s4 + $0x38] sm:$0xf] %v1422
  %1455 = vst [vmem:[%s4 + $0x3c] sm:$0xf] %v1423
  // Predicated region
  $region18: #{sparse_segmentation_net.5} parent=0 // pred_check
    _
  $region19: #{sparse_segmentation_net.5} parent=0 // pred_check_branch
    %1457 = sbr.rel (0) target = $region21
  $region20: #{sparse_segmentation_net.5} parent=0 // pred_region
    _
  $region21: #{sparse_segmentation_net.5} parent=0 // pred_fallthru
    _
  // Predicated region
  $region22: #{sparse_segmentation_net.5} parent=0 // pred_check
    _
  $region23: #{sparse_segmentation_net.5} parent=0 // pred_check_branch
    %1459 = sbr.rel (0) target = $region25
  $region24: #{sparse_segmentation_net.5} parent=0 // pred_region
    _
  $region25: #{sparse_segmentation_net.5} parent=0 // pred_fallthru
    _

</llo_original>
